<compile_context>
chip_gen: v7x
topology: tpu7x:2x2x1
jax: 0.10.0
libtpu: 0.0.40
codegen_flags: <defaults>
</compile_context>

<pallas_src>
import jax
import jax.numpy as jnp
from jax.experimental import pallas as pl
from jax.experimental.pallas import tpu as pltpu


def _round_up(x, m):
    return ((x + m - 1) // m) * m


def prepare_fused_table(emb, bias):
    """Fuse a (V, D) embedding table and its (V, 1) bias into a lane-padded
    (V, Dp) table with Dp = round_up(D + 1, 128).

    Columns [0, D) hold the embedding row, column D holds the bias, the rest
    is zero padding so every gathered row is a whole number of 128-lane
    groups.  Call once at model-setup time (not per forward call)."""
    V, D = emb.shape
    Dp = _round_up(D + 1, 128)
    fused = jnp.zeros((V, Dp), dtype=jnp.float32)
    fused = fused.at[:, :D].set(emb.astype(jnp.float32))
    fused = fused.at[:, D].set(bias.astype(jnp.float32)[:, 0])
    return fused


def _glove_gather_kernel(ctr_idx_ref, cxt_idx_ref,      # scalar prefetch (SMEM)
                         ctr_tbl_ref, cxt_tbl_ref,      # fused tables (VMEM or HBM)
                         ctr_out_ref, cxt_out_ref,      # outputs (TB, Dp) in VMEM
                         ctr_buf, cxt_buf,              # scratch (TB, Dp) in VMEM
                         ctr_sems, cxt_sems):           # DMA semaphores (TB,)
    tb = ctr_out_ref.shape[0]
    base = pl.program_id(0) * tb

    # Build all 2*TB single-row copy descriptors up front (scalar index reads
    # happen before any .wait(), keeping SMEM store->load forwarding intact).
    copies = []
    for t in range(tb):
        ctr_idx = ctr_idx_ref[base + t]
        cxt_idx = cxt_idx_ref[base + t]
        copies.append(pltpu.make_async_copy(
            ctr_tbl_ref.at[pl.ds(ctr_idx, 1)], ctr_buf.at[pl.ds(t, 1)],
            ctr_sems.at[t]))
        copies.append(pltpu.make_async_copy(
            cxt_tbl_ref.at[pl.ds(cxt_idx, 1)], cxt_buf.at[pl.ds(t, 1)],
            cxt_sems.at[t]))

    # Start everything first so all row fetches are in flight together ...
    for cp in copies:
        cp.start()
    # ... then wait for all of them.
    for cp in copies:
        cp.wait()

    # Full (TB, Dp) unmasked vector stores into the pipelined output blocks.
    ctr_out_ref[...] = ctr_buf[...]
    cxt_out_ref[...] = cxt_buf[...]


def glove_forward(ctr, cxt, ctr_fused, cxt_fused, embed_dim, *,
                  batch_tile=8, resident_vmem_budget=4 * 1024 * 1024):
    """ctr/cxt: (B,) integer token ids; *_fused: (V, Dp) fused tables from
    prepare_fused_table.  Returns (ctr_embed, cxt_embed, ctr_bias, cxt_bias)
    with shapes (B, D), (B, D), (B, 1), (B, 1) — matching the PyTorch module.

    Indices are clamped to [0, V) (PyTorch would raise on out-of-range)."""
    B = ctr.shape[0]
    V, Dp = ctr_fused.shape
    D = embed_dim

    # Clamp + cast (essentially free; makes OOB indices well-defined).
    ctr_idx = jnp.clip(ctr.astype(jnp.int32), 0, V - 1)
    cxt_idx = jnp.clip(cxt.astype(jnp.int32), 0, V - 1)

    TB = max(8, _round_up(batch_tile, 8))       # multiple of 8 -> (8,128) tiles
    B_pad = _round_up(max(B, 1), TB)
    if B_pad != B:
        pad = B_pad - B
        ctr_idx = jnp.pad(ctr_idx, (0, pad))    # pads with index 0 (valid row)
        cxt_idx = jnp.pad(cxt_idx, (0, pad))
    num_tiles = B_pad // TB

    # Small-vocab fast path: keep both fused tables VMEM-resident (constant
    # index_map => fetched once, never re-DMA'd); otherwise leave them in HBM
    # and gather rows straight from HBM.  Budget is conservative so it is safe
    # even on v7x's smaller VMEM with double-buffered blocks.
    tables_bytes = 2 * V * Dp * 4
    if tables_bytes <= resident_vmem_budget:
        table_spec = pl.BlockSpec((V, Dp), lambda i, c, x: (0, 0))
    else:
        table_spec = pl.BlockSpec(memory_space=pl.ANY)

    grid_spec = pltpu.PrefetchScalarGridSpec(
        num_scalar_prefetch=2,
        grid=(num_tiles,),
        in_specs=[table_spec, table_spec],
        out_specs=[
            pl.BlockSpec((TB, Dp), lambda i, c, x: (i, 0)),
            pl.BlockSpec((TB, Dp), lambda i, c, x: (i, 0)),
        ],
        scratch_shapes=[
            pltpu.VMEM((TB, Dp), jnp.float32),
            pltpu.VMEM((TB, Dp), jnp.float32),
            pltpu.SemaphoreType.DMA((TB,)),
            pltpu.SemaphoreType.DMA((TB,)),
        ],
    )

    out_shapes = (
        jax.ShapeDtypeStruct((B_pad, Dp), jnp.float32),
        jax.ShapeDtypeStruct((B_pad, Dp), jnp.float32),
    )

    ctr_rows, cxt_rows = pl.pallas_call(
        _glove_gather_kernel,
        out_shape=out_shapes,
        grid_spec=grid_spec,
        compiler_params=pltpu.CompilerParams(
            dimension_semantics=("parallel",),   # shard batch tiles across TCs (v7x)
            vmem_limit_bytes=32 * 1024 * 1024,   # explicit, safe on v5e/v6e/v7x
        ),
    )(ctr_idx, cxt_idx, ctr_fused, cxt_fused)

    # Slice back to the module's return signature (embedding cols + fused bias
    # column).  Downstream consumers could instead take the padded rows as-is.
    ctr_embed = ctr_rows[:B, :D]
    cxt_embed = cxt_rows[:B, :D]
    ctr_bias = ctr_rows[:B, D:D + 1]
    cxt_bias = cxt_rows[:B, D:D + 1]
    return ctr_embed, cxt_embed, ctr_bias, cxt_bias


if __name__ == "__main__":
    # Small config consistent with the module:
    #   config_dict['model']['embed_dim']   = 32
    #   config_dict['dataset']['num_vocab'] = 63  ->  num_vocab = 64
    D = 32
    V = 64
    B = 32          # 4 batch tiles of 8 -> even grid length (v7x megacore)

    key = jax.random.PRNGKey(0)
    k1, k2, k3, k4, k5, k6 = jax.random.split(key, 6)

    # Deterministic synthetic parameters (nn.Embedding default dtype: float32).
    ctr_emb = jax.random.normal(k1, (V, D), dtype=jnp.float32)
    cxt_emb = jax.random.normal(k2, (V, D), dtype=jnp.float32)
    ctr_bias = jax.random.normal(k3, (V, 1), dtype=jnp.float32)
    cxt_bias = jax.random.normal(k4, (V, 1), dtype=jnp.float32)

    # Token index inputs (PyTorch forward casts to long; we use int32).
    ctr = jax.random.randint(k5, (B,), 0, V, dtype=jnp.int32)
    cxt = jax.random.randint(k6, (B,), 0, V, dtype=jnp.int32)

    # One-time table fusion (setup cost, not per-call).
    ctr_fused = prepare_fused_table(ctr_emb, ctr_bias)
    cxt_fused = prepare_fused_table(cxt_emb, cxt_bias)

    # Default dispatch: small vocab -> VMEM-resident tables.
    outs_resident = jax.block_until_ready(
        glove_forward(ctr, cxt, ctr_fused, cxt_fused, D))
    # Also exercise the streaming HBM-gather path used for large vocabularies.
    outs_streaming = jax.block_until_ready(
        glove_forward(ctr, cxt, ctr_fused, cxt_fused, D,
                      resident_vmem_budget=0))

    # Pure-JAX reference (the gather is exact, bit-for-bit).
    ref = (ctr_emb[ctr], cxt_emb[cxt], ctr_bias[ctr], cxt_bias[cxt])
    for outs in (outs_resident, outs_streaming):
        ctr_e, cxt_e, ctr_b, cxt_b = outs
        assert ctr_e.shape == (B, D) and cxt_e.shape == (B, D)
        assert ctr_b.shape == (B, 1) and cxt_b.shape == (B, 1)
        assert jnp.array_equal(ctr_e, ref[0])
        assert jnp.array_equal(cxt_e, ref[1])
        assert jnp.array_equal(ctr_b, ref[2])
        assert jnp.array_equal(cxt_b, ref[3])

    print("KERNEL_OK")
</pallas_src>

<mosaic_0001>
module attributes {stable_mosaic.version = 11 : i64} {
  func.func @_glove_gather_kernel(%arg0: i32, %arg1: memref<32xi32, #tpu.memory_space<smem>>, %arg2: memref<32xi32, #tpu.memory_space<smem>>, %arg3: memref<64x128xf32, #tpu.memory_space<vmem>>, %arg4: memref<64x128xf32, #tpu.memory_space<vmem>>, %arg5: memref<8x128xf32, #tpu.memory_space<vmem>>, %arg6: memref<8x128xf32, #tpu.memory_space<vmem>>, %arg7: memref<8x128xf32, #tpu.memory_space<vmem>>, %arg8: memref<8x128xf32, #tpu.memory_space<vmem>>, %arg9: memref<8x!tpu.dma_semaphore, #tpu.memory_space<semaphore_mem>>, %arg10: memref<8x!tpu.dma_semaphore, #tpu.memory_space<semaphore_mem>>) attributes {dimension_semantics = [#tpu.dimension_semantics<parallel>], iteration_bounds = array<i64: 4>, scalar_prefetch = 2 : i64, scratch_operands = 4 : i64, tpu.core_type = #tpu.core_type<tc>, window_params = [{pipeline_mode = #tpu.pipeline_mode<synchronous>, transform_indices = @transform_0, window_bounds = array<i64: 64, 128>}, {pipeline_mode = #tpu.pipeline_mode<synchronous>, transform_indices = @transform_1, window_bounds = array<i64: 64, 128>}, {transform_indices = @transform_2, window_bounds = array<i64: 8, 128>}, {transform_indices = @transform_3, window_bounds = array<i64: 8, 128>}]} {
    %c8_i32 = arith.constant 8 : i32
    %0 = arith.muli %arg0, %c8_i32 : i32
    %c0_i32 = arith.constant 0 : i32
    %1 = arith.addi %0, %c0_i32 : i32
    %2 = arith.index_cast %1 : i32 to index
    %3 = memref.load %arg1[%2] : memref<32xi32, #tpu.memory_space<smem>>
    %c0_i32_0 = arith.constant 0 : i32
    %4 = arith.addi %0, %c0_i32_0 : i32
    %5 = arith.index_cast %4 : i32 to index
    %6 = memref.load %arg2[%5] : memref<32xi32, #tpu.memory_space<smem>>
    %c1_i32 = arith.constant 1 : i32
    %7 = arith.addi %0, %c1_i32 : i32
    %8 = arith.index_cast %7 : i32 to index
    %9 = memref.load %arg1[%8] : memref<32xi32, #tpu.memory_space<smem>>
    %c1_i32_1 = arith.constant 1 : i32
    %10 = arith.addi %0, %c1_i32_1 : i32
    %11 = arith.index_cast %10 : i32 to index
    %12 = memref.load %arg2[%11] : memref<32xi32, #tpu.memory_space<smem>>
    %c2_i32 = arith.constant 2 : i32
    %13 = arith.addi %0, %c2_i32 : i32
    %14 = arith.index_cast %13 : i32 to index
    %15 = memref.load %arg1[%14] : memref<32xi32, #tpu.memory_space<smem>>
    %c2_i32_2 = arith.constant 2 : i32
    %16 = arith.addi %0, %c2_i32_2 : i32
    %17 = arith.index_cast %16 : i32 to index
    %18 = memref.load %arg2[%17] : memref<32xi32, #tpu.memory_space<smem>>
    %c3_i32 = arith.constant 3 : i32
    %19 = arith.addi %0, %c3_i32 : i32
    %20 = arith.index_cast %19 : i32 to index
    %21 = memref.load %arg1[%20] : memref<32xi32, #tpu.memory_space<smem>>
    %c3_i32_3 = arith.constant 3 : i32
    %22 = arith.addi %0, %c3_i32_3 : i32
    %23 = arith.index_cast %22 : i32 to index
    %24 = memref.load %arg2[%23] : memref<32xi32, #tpu.memory_space<smem>>
    %c4_i32 = arith.constant 4 : i32
    %25 = arith.addi %0, %c4_i32 : i32
    %26 = arith.index_cast %25 : i32 to index
    %27 = memref.load %arg1[%26] : memref<32xi32, #tpu.memory_space<smem>>
    %c4_i32_4 = arith.constant 4 : i32
    %28 = arith.addi %0, %c4_i32_4 : i32
    %29 = arith.index_cast %28 : i32 to index
    %30 = memref.load %arg2[%29] : memref<32xi32, #tpu.memory_space<smem>>
    %c5_i32 = arith.constant 5 : i32
    %31 = arith.addi %0, %c5_i32 : i32
    %32 = arith.index_cast %31 : i32 to index
    %33 = memref.load %arg1[%32] : memref<32xi32, #tpu.memory_space<smem>>
    %c5_i32_5 = arith.constant 5 : i32
    %34 = arith.addi %0, %c5_i32_5 : i32
    %35 = arith.index_cast %34 : i32 to index
    %36 = memref.load %arg2[%35] : memref<32xi32, #tpu.memory_space<smem>>
    %c6_i32 = arith.constant 6 : i32
    %37 = arith.addi %0, %c6_i32 : i32
    %38 = arith.index_cast %37 : i32 to index
    %39 = memref.load %arg1[%38] : memref<32xi32, #tpu.memory_space<smem>>
    %c6_i32_6 = arith.constant 6 : i32
    %40 = arith.addi %0, %c6_i32_6 : i32
    %41 = arith.index_cast %40 : i32 to index
    %42 = memref.load %arg2[%41] : memref<32xi32, #tpu.memory_space<smem>>
    %c7_i32 = arith.constant 7 : i32
    %43 = arith.addi %0, %c7_i32 : i32
    %44 = arith.index_cast %43 : i32 to index
    %45 = memref.load %arg1[%44] : memref<32xi32, #tpu.memory_space<smem>>
    %c7_i32_7 = arith.constant 7 : i32
    %46 = arith.addi %0, %c7_i32_7 : i32
    %47 = arith.index_cast %46 : i32 to index
    %48 = memref.load %arg2[%47] : memref<32xi32, #tpu.memory_space<smem>>
    %c0_i32_8 = arith.constant 0 : i32
    %c0_i32_9 = arith.constant 0 : i32
    %49 = tpu.memref_slice %arg3[%3, %c0_i32_9] : memref<64x128xf32, #tpu.memory_space<vmem>> -> memref<1x128xf32, #tpu.memory_space<vmem>>
    %c0_i32_10 = arith.constant 0 : i32
    %c0_i32_11 = arith.constant 0 : i32
    %50 = tpu.memref_slice %arg7[%c0_i32_10, %c0_i32_11] : memref<8x128xf32, #tpu.memory_space<vmem>> -> memref<1x128xf32, #tpu.memory_space<vmem>>
    %51 = tpu.memref_slice %arg9[%c0_i32_8] : memref<8x!tpu.dma_semaphore, #tpu.memory_space<semaphore_mem>> -> memref<1x!tpu.dma_semaphore, #tpu.memory_space<semaphore_mem>>
    %52 = tpu.memref_squeeze %51 : memref<1x!tpu.dma_semaphore, #tpu.memory_space<semaphore_mem>> -> memref<!tpu.dma_semaphore, #tpu.memory_space<semaphore_mem>>
    tpu.enqueue_dma source(%49 : memref<1x128xf32, #tpu.memory_space<vmem>>) target(%50 : memref<1x128xf32, #tpu.memory_space<vmem>>) target_semaphore(%52 : memref<!tpu.dma_semaphore, #tpu.memory_space<semaphore_mem>>)
    %c0_i32_12 = arith.constant 0 : i32
    %c0_i32_13 = arith.constant 0 : i32
    %53 = tpu.memref_slice %arg4[%6, %c0_i32_13] : memref<64x128xf32, #tpu.memory_space<vmem>> -> memref<1x128xf32, #tpu.memory_space<vmem>>
    %c0_i32_14 = arith.constant 0 : i32
    %c0_i32_15 = arith.constant 0 : i32
    %54 = tpu.memref_slice %arg8[%c0_i32_14, %c0_i32_15] : memref<8x128xf32, #tpu.memory_space<vmem>> -> memref<1x128xf32, #tpu.memory_space<vmem>>
    %55 = tpu.memref_slice %arg10[%c0_i32_12] : memref<8x!tpu.dma_semaphore, #tpu.memory_space<semaphore_mem>> -> memref<1x!tpu.dma_semaphore, #tpu.memory_space<semaphore_mem>>
    %56 = tpu.memref_squeeze %55 : memref<1x!tpu.dma_semaphore, #tpu.memory_space<semaphore_mem>> -> memref<!tpu.dma_semaphore, #tpu.memory_space<semaphore_mem>>
    tpu.enqueue_dma source(%53 : memref<1x128xf32, #tpu.memory_space<vmem>>) target(%54 : memref<1x128xf32, #tpu.memory_space<vmem>>) target_semaphore(%56 : memref<!tpu.dma_semaphore, #tpu.memory_space<semaphore_mem>>)
    %c1_i32_16 = arith.constant 1 : i32
    %c0_i32_17 = arith.constant 0 : i32
    %57 = tpu.memref_slice %arg3[%9, %c0_i32_17] : memref<64x128xf32, #tpu.memory_space<vmem>> -> memref<1x128xf32, #tpu.memory_space<vmem>>
    %c1_i32_18 = arith.constant 1 : i32
    %c0_i32_19 = arith.constant 0 : i32
    %58 = tpu.memref_slice %arg7[%c1_i32_18, %c0_i32_19] : memref<8x128xf32, #tpu.memory_space<vmem>> -> memref<1x128xf32, #tpu.memory_space<vmem>>
    %59 = tpu.memref_slice %arg9[%c1_i32_16] : memref<8x!tpu.dma_semaphore, #tpu.memory_space<semaphore_mem>> -> memref<1x!tpu.dma_semaphore, #tpu.memory_space<semaphore_mem>>
    %60 = tpu.memref_squeeze %59 : memref<1x!tpu.dma_semaphore, #tpu.memory_space<semaphore_mem>> -> memref<!tpu.dma_semaphore, #tpu.memory_space<semaphore_mem>>
    tpu.enqueue_dma source(%57 : memref<1x128xf32, #tpu.memory_space<vmem>>) target(%58 : memref<1x128xf32, #tpu.memory_space<vmem>>) target_semaphore(%60 : memref<!tpu.dma_semaphore, #tpu.memory_space<semaphore_mem>>)
    %c1_i32_20 = arith.constant 1 : i32
    %c0_i32_21 = arith.constant 0 : i32
    %61 = tpu.memref_slice %arg4[%12, %c0_i32_21] : memref<64x128xf32, #tpu.memory_space<vmem>> -> memref<1x128xf32, #tpu.memory_space<vmem>>
    %c1_i32_22 = arith.constant 1 : i32
    %c0_i32_23 = arith.constant 0 : i32
    %62 = tpu.memref_slice %arg8[%c1_i32_22, %c0_i32_23] : memref<8x128xf32, #tpu.memory_space<vmem>> -> memref<1x128xf32, #tpu.memory_space<vmem>>
    %63 = tpu.memref_slice %arg10[%c1_i32_20] : memref<8x!tpu.dma_semaphore, #tpu.memory_space<semaphore_mem>> -> memref<1x!tpu.dma_semaphore, #tpu.memory_space<semaphore_mem>>
    %64 = tpu.memref_squeeze %63 : memref<1x!tpu.dma_semaphore, #tpu.memory_space<semaphore_mem>> -> memref<!tpu.dma_semaphore, #tpu.memory_space<semaphore_mem>>
    tpu.enqueue_dma source(%61 : memref<1x128xf32, #tpu.memory_space<vmem>>) target(%62 : memref<1x128xf32, #tpu.memory_space<vmem>>) target_semaphore(%64 : memref<!tpu.dma_semaphore, #tpu.memory_space<semaphore_mem>>)
    %c2_i32_24 = arith.constant 2 : i32
    %c0_i32_25 = arith.constant 0 : i32
    %65 = tpu.memref_slice %arg3[%15, %c0_i32_25] : memref<64x128xf32, #tpu.memory_space<vmem>> -> memref<1x128xf32, #tpu.memory_space<vmem>>
    %c2_i32_26 = arith.constant 2 : i32
    %c0_i32_27 = arith.constant 0 : i32
    %66 = tpu.memref_slice %arg7[%c2_i32_26, %c0_i32_27] : memref<8x128xf32, #tpu.memory_space<vmem>> -> memref<1x128xf32, #tpu.memory_space<vmem>>
    %67 = tpu.memref_slice %arg9[%c2_i32_24] : memref<8x!tpu.dma_semaphore, #tpu.memory_space<semaphore_mem>> -> memref<1x!tpu.dma_semaphore, #tpu.memory_space<semaphore_mem>>
    %68 = tpu.memref_squeeze %67 : memref<1x!tpu.dma_semaphore, #tpu.memory_space<semaphore_mem>> -> memref<!tpu.dma_semaphore, #tpu.memory_space<semaphore_mem>>
    tpu.enqueue_dma source(%65 : memref<1x128xf32, #tpu.memory_space<vmem>>) target(%66 : memref<1x128xf32, #tpu.memory_space<vmem>>) target_semaphore(%68 : memref<!tpu.dma_semaphore, #tpu.memory_space<semaphore_mem>>)
    %c2_i32_28 = arith.constant 2 : i32
    %c0_i32_29 = arith.constant 0 : i32
    %69 = tpu.memref_slice %arg4[%18, %c0_i32_29] : memref<64x128xf32, #tpu.memory_space<vmem>> -> memref<1x128xf32, #tpu.memory_space<vmem>>
    %c2_i32_30 = arith.constant 2 : i32
    %c0_i32_31 = arith.constant 0 : i32
    %70 = tpu.memref_slice %arg8[%c2_i32_30, %c0_i32_31] : memref<8x128xf32, #tpu.memory_space<vmem>> -> memref<1x128xf32, #tpu.memory_space<vmem>>
    %71 = tpu.memref_slice %arg10[%c2_i32_28] : memref<8x!tpu.dma_semaphore, #tpu.memory_space<semaphore_mem>> -> memref<1x!tpu.dma_semaphore, #tpu.memory_space<semaphore_mem>>
    %72 = tpu.memref_squeeze %71 : memref<1x!tpu.dma_semaphore, #tpu.memory_space<semaphore_mem>> -> memref<!tpu.dma_semaphore, #tpu.memory_space<semaphore_mem>>
    tpu.enqueue_dma source(%69 : memref<1x128xf32, #tpu.memory_space<vmem>>) target(%70 : memref<1x128xf32, #tpu.memory_space<vmem>>) target_semaphore(%72 : memref<!tpu.dma_semaphore, #tpu.memory_space<semaphore_mem>>)
    %c3_i32_32 = arith.constant 3 : i32
    %c0_i32_33 = arith.constant 0 : i32
    %73 = tpu.memref_slice %arg3[%21, %c0_i32_33] : memref<64x128xf32, #tpu.memory_space<vmem>> -> memref<1x128xf32, #tpu.memory_space<vmem>>
    %c3_i32_34 = arith.constant 3 : i32
    %c0_i32_35 = arith.constant 0 : i32
    %74 = tpu.memref_slice %arg7[%c3_i32_34, %c0_i32_35] : memref<8x128xf32, #tpu.memory_space<vmem>> -> memref<1x128xf32, #tpu.memory_space<vmem>>
    %75 = tpu.memref_slice %arg9[%c3_i32_32] : memref<8x!tpu.dma_semaphore, #tpu.memory_space<semaphore_mem>> -> memref<1x!tpu.dma_semaphore, #tpu.memory_space<semaphore_mem>>
    %76 = tpu.memref_squeeze %75 : memref<1x!tpu.dma_semaphore, #tpu.memory_space<semaphore_mem>> -> memref<!tpu.dma_semaphore, #tpu.memory_space<semaphore_mem>>
    tpu.enqueue_dma source(%73 : memref<1x128xf32, #tpu.memory_space<vmem>>) target(%74 : memref<1x128xf32, #tpu.memory_space<vmem>>) target_semaphore(%76 : memref<!tpu.dma_semaphore, #tpu.memory_space<semaphore_mem>>)
    %c3_i32_36 = arith.constant 3 : i32
    %c0_i32_37 = arith.constant 0 : i32
    %77 = tpu.memref_slice %arg4[%24, %c0_i32_37] : memref<64x128xf32, #tpu.memory_space<vmem>> -> memref<1x128xf32, #tpu.memory_space<vmem>>
    %c3_i32_38 = arith.constant 3 : i32
    %c0_i32_39 = arith.constant 0 : i32
    %78 = tpu.memref_slice %arg8[%c3_i32_38, %c0_i32_39] : memref<8x128xf32, #tpu.memory_space<vmem>> -> memref<1x128xf32, #tpu.memory_space<vmem>>
    %79 = tpu.memref_slice %arg10[%c3_i32_36] : memref<8x!tpu.dma_semaphore, #tpu.memory_space<semaphore_mem>> -> memref<1x!tpu.dma_semaphore, #tpu.memory_space<semaphore_mem>>
    %80 = tpu.memref_squeeze %79 : memref<1x!tpu.dma_semaphore, #tpu.memory_space<semaphore_mem>> -> memref<!tpu.dma_semaphore, #tpu.memory_space<semaphore_mem>>
    tpu.enqueue_dma source(%77 : memref<1x128xf32, #tpu.memory_space<vmem>>) target(%78 : memref<1x128xf32, #tpu.memory_space<vmem>>) target_semaphore(%80 : memref<!tpu.dma_semaphore, #tpu.memory_space<semaphore_mem>>)
    %c4_i32_40 = arith.constant 4 : i32
    %c0_i32_41 = arith.constant 0 : i32
    %81 = tpu.memref_slice %arg3[%27, %c0_i32_41] : memref<64x128xf32, #tpu.memory_space<vmem>> -> memref<1x128xf32, #tpu.memory_space<vmem>>
    %c4_i32_42 = arith.constant 4 : i32
    %c0_i32_43 = arith.constant 0 : i32
    %82 = tpu.memref_slice %arg7[%c4_i32_42, %c0_i32_43] : memref<8x128xf32, #tpu.memory_space<vmem>> -> memref<1x128xf32, #tpu.memory_space<vmem>>
    %83 = tpu.memref_slice %arg9[%c4_i32_40] : memref<8x!tpu.dma_semaphore, #tpu.memory_space<semaphore_mem>> -> memref<1x!tpu.dma_semaphore, #tpu.memory_space<semaphore_mem>>
    %84 = tpu.memref_squeeze %83 : memref<1x!tpu.dma_semaphore, #tpu.memory_space<semaphore_mem>> -> memref<!tpu.dma_semaphore, #tpu.memory_space<semaphore_mem>>
    tpu.enqueue_dma source(%81 : memref<1x128xf32, #tpu.memory_space<vmem>>) target(%82 : memref<1x128xf32, #tpu.memory_space<vmem>>) target_semaphore(%84 : memref<!tpu.dma_semaphore, #tpu.memory_space<semaphore_mem>>)
    %c4_i32_44 = arith.constant 4 : i32
    %c0_i32_45 = arith.constant 0 : i32
    %85 = tpu.memref_slice %arg4[%30, %c0_i32_45] : memref<64x128xf32, #tpu.memory_space<vmem>> -> memref<1x128xf32, #tpu.memory_space<vmem>>
    %c4_i32_46 = arith.constant 4 : i32
    %c0_i32_47 = arith.constant 0 : i32
    %86 = tpu.memref_slice %arg8[%c4_i32_46, %c0_i32_47] : memref<8x128xf32, #tpu.memory_space<vmem>> -> memref<1x128xf32, #tpu.memory_space<vmem>>
    %87 = tpu.memref_slice %arg10[%c4_i32_44] : memref<8x!tpu.dma_semaphore, #tpu.memory_space<semaphore_mem>> -> memref<1x!tpu.dma_semaphore, #tpu.memory_space<semaphore_mem>>
    %88 = tpu.memref_squeeze %87 : memref<1x!tpu.dma_semaphore, #tpu.memory_space<semaphore_mem>> -> memref<!tpu.dma_semaphore, #tpu.memory_space<semaphore_mem>>
    tpu.enqueue_dma source(%85 : memref<1x128xf32, #tpu.memory_space<vmem>>) target(%86 : memref<1x128xf32, #tpu.memory_space<vmem>>) target_semaphore(%88 : memref<!tpu.dma_semaphore, #tpu.memory_space<semaphore_mem>>)
    %c5_i32_48 = arith.constant 5 : i32
    %c0_i32_49 = arith.constant 0 : i32
    %89 = tpu.memref_slice %arg3[%33, %c0_i32_49] : memref<64x128xf32, #tpu.memory_space<vmem>> -> memref<1x128xf32, #tpu.memory_space<vmem>>
    %c5_i32_50 = arith.constant 5 : i32
    %c0_i32_51 = arith.constant 0 : i32
    %90 = tpu.memref_slice %arg7[%c5_i32_50, %c0_i32_51] : memref<8x128xf32, #tpu.memory_space<vmem>> -> memref<1x128xf32, #tpu.memory_space<vmem>>
    %91 = tpu.memref_slice %arg9[%c5_i32_48] : memref<8x!tpu.dma_semaphore, #tpu.memory_space<semaphore_mem>> -> memref<1x!tpu.dma_semaphore, #tpu.memory_space<semaphore_mem>>
    %92 = tpu.memref_squeeze %91 : memref<1x!tpu.dma_semaphore, #tpu.memory_space<semaphore_mem>> -> memref<!tpu.dma_semaphore, #tpu.memory_space<semaphore_mem>>
    tpu.enqueue_dma source(%89 : memref<1x128xf32, #tpu.memory_space<vmem>>) target(%90 : memref<1x128xf32, #tpu.memory_space<vmem>>) target_semaphore(%92 : memref<!tpu.dma_semaphore, #tpu.memory_space<semaphore_mem>>)
    %c5_i32_52 = arith.constant 5 : i32
    %c0_i32_53 = arith.constant 0 : i32
    %93 = tpu.memref_slice %arg4[%36, %c0_i32_53] : memref<64x128xf32, #tpu.memory_space<vmem>> -> memref<1x128xf32, #tpu.memory_space<vmem>>
    %c5_i32_54 = arith.constant 5 : i32
    %c0_i32_55 = arith.constant 0 : i32
    %94 = tpu.memref_slice %arg8[%c5_i32_54, %c0_i32_55] : memref<8x128xf32, #tpu.memory_space<vmem>> -> memref<1x128xf32, #tpu.memory_space<vmem>>
    %95 = tpu.memref_slice %arg10[%c5_i32_52] : memref<8x!tpu.dma_semaphore, #tpu.memory_space<semaphore_mem>> -> memref<1x!tpu.dma_semaphore, #tpu.memory_space<semaphore_mem>>
    %96 = tpu.memref_squeeze %95 : memref<1x!tpu.dma_semaphore, #tpu.memory_space<semaphore_mem>> -> memref<!tpu.dma_semaphore, #tpu.memory_space<semaphore_mem>>
    tpu.enqueue_dma source(%93 : memref<1x128xf32, #tpu.memory_space<vmem>>) target(%94 : memref<1x128xf32, #tpu.memory_space<vmem>>) target_semaphore(%96 : memref<!tpu.dma_semaphore, #tpu.memory_space<semaphore_mem>>)
    %c6_i32_56 = arith.constant 6 : i32
    %c0_i32_57 = arith.constant 0 : i32
    %97 = tpu.memref_slice %arg3[%39, %c0_i32_57] : memref<64x128xf32, #tpu.memory_space<vmem>> -> memref<1x128xf32, #tpu.memory_space<vmem>>
    %c6_i32_58 = arith.constant 6 : i32
    %c0_i32_59 = arith.constant 0 : i32
    %98 = tpu.memref_slice %arg7[%c6_i32_58, %c0_i32_59] : memref<8x128xf32, #tpu.memory_space<vmem>> -> memref<1x128xf32, #tpu.memory_space<vmem>>
    %99 = tpu.memref_slice %arg9[%c6_i32_56] : memref<8x!tpu.dma_semaphore, #tpu.memory_space<semaphore_mem>> -> memref<1x!tpu.dma_semaphore, #tpu.memory_space<semaphore_mem>>
    %100 = tpu.memref_squeeze %99 : memref<1x!tpu.dma_semaphore, #tpu.memory_space<semaphore_mem>> -> memref<!tpu.dma_semaphore, #tpu.memory_space<semaphore_mem>>
    tpu.enqueue_dma source(%97 : memref<1x128xf32, #tpu.memory_space<vmem>>) target(%98 : memref<1x128xf32, #tpu.memory_space<vmem>>) target_semaphore(%100 : memref<!tpu.dma_semaphore, #tpu.memory_space<semaphore_mem>>)
    %c6_i32_60 = arith.constant 6 : i32
    %c0_i32_61 = arith.constant 0 : i32
    %101 = tpu.memref_slice %arg4[%42, %c0_i32_61] : memref<64x128xf32, #tpu.memory_space<vmem>> -> memref<1x128xf32, #tpu.memory_space<vmem>>
    %c6_i32_62 = arith.constant 6 : i32
    %c0_i32_63 = arith.constant 0 : i32
    %102 = tpu.memref_slice %arg8[%c6_i32_62, %c0_i32_63] : memref<8x128xf32, #tpu.memory_space<vmem>> -> memref<1x128xf32, #tpu.memory_space<vmem>>
    %103 = tpu.memref_slice %arg10[%c6_i32_60] : memref<8x!tpu.dma_semaphore, #tpu.memory_space<semaphore_mem>> -> memref<1x!tpu.dma_semaphore, #tpu.memory_space<semaphore_mem>>
    %104 = tpu.memref_squeeze %103 : memref<1x!tpu.dma_semaphore, #tpu.memory_space<semaphore_mem>> -> memref<!tpu.dma_semaphore, #tpu.memory_space<semaphore_mem>>
    tpu.enqueue_dma source(%101 : memref<1x128xf32, #tpu.memory_space<vmem>>) target(%102 : memref<1x128xf32, #tpu.memory_space<vmem>>) target_semaphore(%104 : memref<!tpu.dma_semaphore, #tpu.memory_space<semaphore_mem>>)
    %c7_i32_64 = arith.constant 7 : i32
    %c0_i32_65 = arith.constant 0 : i32
    %105 = tpu.memref_slice %arg3[%45, %c0_i32_65] : memref<64x128xf32, #tpu.memory_space<vmem>> -> memref<1x128xf32, #tpu.memory_space<vmem>>
    %c7_i32_66 = arith.constant 7 : i32
    %c0_i32_67 = arith.constant 0 : i32
    %106 = tpu.memref_slice %arg7[%c7_i32_66, %c0_i32_67] : memref<8x128xf32, #tpu.memory_space<vmem>> -> memref<1x128xf32, #tpu.memory_space<vmem>>
    %107 = tpu.memref_slice %arg9[%c7_i32_64] : memref<8x!tpu.dma_semaphore, #tpu.memory_space<semaphore_mem>> -> memref<1x!tpu.dma_semaphore, #tpu.memory_space<semaphore_mem>>
    %108 = tpu.memref_squeeze %107 : memref<1x!tpu.dma_semaphore, #tpu.memory_space<semaphore_mem>> -> memref<!tpu.dma_semaphore, #tpu.memory_space<semaphore_mem>>
    tpu.enqueue_dma source(%105 : memref<1x128xf32, #tpu.memory_space<vmem>>) target(%106 : memref<1x128xf32, #tpu.memory_space<vmem>>) target_semaphore(%108 : memref<!tpu.dma_semaphore, #tpu.memory_space<semaphore_mem>>)
    %c7_i32_68 = arith.constant 7 : i32
    %c0_i32_69 = arith.constant 0 : i32
    %109 = tpu.memref_slice %arg4[%48, %c0_i32_69] : memref<64x128xf32, #tpu.memory_space<vmem>> -> memref<1x128xf32, #tpu.memory_space<vmem>>
    %c7_i32_70 = arith.constant 7 : i32
    %c0_i32_71 = arith.constant 0 : i32
    %110 = tpu.memref_slice %arg8[%c7_i32_70, %c0_i32_71] : memref<8x128xf32, #tpu.memory_space<vmem>> -> memref<1x128xf32, #tpu.memory_space<vmem>>
    %111 = tpu.memref_slice %arg10[%c7_i32_68] : memref<8x!tpu.dma_semaphore, #tpu.memory_space<semaphore_mem>> -> memref<1x!tpu.dma_semaphore, #tpu.memory_space<semaphore_mem>>
    %112 = tpu.memref_squeeze %111 : memref<1x!tpu.dma_semaphore, #tpu.memory_space<semaphore_mem>> -> memref<!tpu.dma_semaphore, #tpu.memory_space<semaphore_mem>>
    tpu.enqueue_dma source(%109 : memref<1x128xf32, #tpu.memory_space<vmem>>) target(%110 : memref<1x128xf32, #tpu.memory_space<vmem>>) target_semaphore(%112 : memref<!tpu.dma_semaphore, #tpu.memory_space<semaphore_mem>>)
    %c0_i32_72 = arith.constant 0 : i32
    %c0_i32_73 = arith.constant 0 : i32
    %113 = tpu.memref_slice %arg3[%3, %c0_i32_73] : memref<64x128xf32, #tpu.memory_space<vmem>> -> memref<1x128xf32, #tpu.memory_space<vmem>>
    %c0_i32_74 = arith.constant 0 : i32
    %c0_i32_75 = arith.constant 0 : i32
    %114 = tpu.memref_slice %arg7[%c0_i32_74, %c0_i32_75] : memref<8x128xf32, #tpu.memory_space<vmem>> -> memref<1x128xf32, #tpu.memory_space<vmem>>
    %115 = tpu.memref_slice %arg9[%c0_i32_72] : memref<8x!tpu.dma_semaphore, #tpu.memory_space<semaphore_mem>> -> memref<1x!tpu.dma_semaphore, #tpu.memory_space<semaphore_mem>>
    %116 = tpu.memref_squeeze %115 : memref<1x!tpu.dma_semaphore, #tpu.memory_space<semaphore_mem>> -> memref<!tpu.dma_semaphore, #tpu.memory_space<semaphore_mem>>
    tpu.wait_dma2 semaphore(%116 : memref<!tpu.dma_semaphore, #tpu.memory_space<semaphore_mem>>) src(%113 : memref<1x128xf32, #tpu.memory_space<vmem>>) dst(%114 : memref<1x128xf32, #tpu.memory_space<vmem>>)
    %c0_i32_76 = arith.constant 0 : i32
    %c0_i32_77 = arith.constant 0 : i32
    %117 = tpu.memref_slice %arg4[%6, %c0_i32_77] : memref<64x128xf32, #tpu.memory_space<vmem>> -> memref<1x128xf32, #tpu.memory_space<vmem>>
    %c0_i32_78 = arith.constant 0 : i32
    %c0_i32_79 = arith.constant 0 : i32
    %118 = tpu.memref_slice %arg8[%c0_i32_78, %c0_i32_79] : memref<8x128xf32, #tpu.memory_space<vmem>> -> memref<1x128xf32, #tpu.memory_space<vmem>>
    %119 = tpu.memref_slice %arg10[%c0_i32_76] : memref<8x!tpu.dma_semaphore, #tpu.memory_space<semaphore_mem>> -> memref<1x!tpu.dma_semaphore, #tpu.memory_space<semaphore_mem>>
    %120 = tpu.memref_squeeze %119 : memref<1x!tpu.dma_semaphore, #tpu.memory_space<semaphore_mem>> -> memref<!tpu.dma_semaphore, #tpu.memory_space<semaphore_mem>>
    tpu.wait_dma2 semaphore(%120 : memref<!tpu.dma_semaphore, #tpu.memory_space<semaphore_mem>>) src(%117 : memref<1x128xf32, #tpu.memory_space<vmem>>) dst(%118 : memref<1x128xf32, #tpu.memory_space<vmem>>)
    %c1_i32_80 = arith.constant 1 : i32
    %c0_i32_81 = arith.constant 0 : i32
    %121 = tpu.memref_slice %arg3[%9, %c0_i32_81] : memref<64x128xf32, #tpu.memory_space<vmem>> -> memref<1x128xf32, #tpu.memory_space<vmem>>
    %c1_i32_82 = arith.constant 1 : i32
    %c0_i32_83 = arith.constant 0 : i32
    %122 = tpu.memref_slice %arg7[%c1_i32_82, %c0_i32_83] : memref<8x128xf32, #tpu.memory_space<vmem>> -> memref<1x128xf32, #tpu.memory_space<vmem>>
    %123 = tpu.memref_slice %arg9[%c1_i32_80] : memref<8x!tpu.dma_semaphore, #tpu.memory_space<semaphore_mem>> -> memref<1x!tpu.dma_semaphore, #tpu.memory_space<semaphore_mem>>
    %124 = tpu.memref_squeeze %123 : memref<1x!tpu.dma_semaphore, #tpu.memory_space<semaphore_mem>> -> memref<!tpu.dma_semaphore, #tpu.memory_space<semaphore_mem>>
    tpu.wait_dma2 semaphore(%124 : memref<!tpu.dma_semaphore, #tpu.memory_space<semaphore_mem>>) src(%121 : memref<1x128xf32, #tpu.memory_space<vmem>>) dst(%122 : memref<1x128xf32, #tpu.memory_space<vmem>>)
    %c1_i32_84 = arith.constant 1 : i32
    %c0_i32_85 = arith.constant 0 : i32
    %125 = tpu.memref_slice %arg4[%12, %c0_i32_85] : memref<64x128xf32, #tpu.memory_space<vmem>> -> memref<1x128xf32, #tpu.memory_space<vmem>>
    %c1_i32_86 = arith.constant 1 : i32
    %c0_i32_87 = arith.constant 0 : i32
    %126 = tpu.memref_slice %arg8[%c1_i32_86, %c0_i32_87] : memref<8x128xf32, #tpu.memory_space<vmem>> -> memref<1x128xf32, #tpu.memory_space<vmem>>
    %127 = tpu.memref_slice %arg10[%c1_i32_84] : memref<8x!tpu.dma_semaphore, #tpu.memory_space<semaphore_mem>> -> memref<1x!tpu.dma_semaphore, #tpu.memory_space<semaphore_mem>>
    %128 = tpu.memref_squeeze %127 : memref<1x!tpu.dma_semaphore, #tpu.memory_space<semaphore_mem>> -> memref<!tpu.dma_semaphore, #tpu.memory_space<semaphore_mem>>
    tpu.wait_dma2 semaphore(%128 : memref<!tpu.dma_semaphore, #tpu.memory_space<semaphore_mem>>) src(%125 : memref<1x128xf32, #tpu.memory_space<vmem>>) dst(%126 : memref<1x128xf32, #tpu.memory_space<vmem>>)
    %c2_i32_88 = arith.constant 2 : i32
    %c0_i32_89 = arith.constant 0 : i32
    %129 = tpu.memref_slice %arg3[%15, %c0_i32_89] : memref<64x128xf32, #tpu.memory_space<vmem>> -> memref<1x128xf32, #tpu.memory_space<vmem>>
    %c2_i32_90 = arith.constant 2 : i32
    %c0_i32_91 = arith.constant 0 : i32
    %130 = tpu.memref_slice %arg7[%c2_i32_90, %c0_i32_91] : memref<8x128xf32, #tpu.memory_space<vmem>> -> memref<1x128xf32, #tpu.memory_space<vmem>>
    %131 = tpu.memref_slice %arg9[%c2_i32_88] : memref<8x!tpu.dma_semaphore, #tpu.memory_space<semaphore_mem>> -> memref<1x!tpu.dma_semaphore, #tpu.memory_space<semaphore_mem>>
    %132 = tpu.memref_squeeze %131 : memref<1x!tpu.dma_semaphore, #tpu.memory_space<semaphore_mem>> -> memref<!tpu.dma_semaphore, #tpu.memory_space<semaphore_mem>>
    tpu.wait_dma2 semaphore(%132 : memref<!tpu.dma_semaphore, #tpu.memory_space<semaphore_mem>>) src(%129 : memref<1x128xf32, #tpu.memory_space<vmem>>) dst(%130 : memref<1x128xf32, #tpu.memory_space<vmem>>)
    %c2_i32_92 = arith.constant 2 : i32
    %c0_i32_93 = arith.constant 0 : i32
    %133 = tpu.memref_slice %arg4[%18, %c0_i32_93] : memref<64x128xf32, #tpu.memory_space<vmem>> -> memref<1x128xf32, #tpu.memory_space<vmem>>
    %c2_i32_94 = arith.constant 2 : i32
    %c0_i32_95 = arith.constant 0 : i32
    %134 = tpu.memref_slice %arg8[%c2_i32_94, %c0_i32_95] : memref<8x128xf32, #tpu.memory_space<vmem>> -> memref<1x128xf32, #tpu.memory_space<vmem>>
    %135 = tpu.memref_slice %arg10[%c2_i32_92] : memref<8x!tpu.dma_semaphore, #tpu.memory_space<semaphore_mem>> -> memref<1x!tpu.dma_semaphore, #tpu.memory_space<semaphore_mem>>
    %136 = tpu.memref_squeeze %135 : memref<1x!tpu.dma_semaphore, #tpu.memory_space<semaphore_mem>> -> memref<!tpu.dma_semaphore, #tpu.memory_space<semaphore_mem>>
    tpu.wait_dma2 semaphore(%136 : memref<!tpu.dma_semaphore, #tpu.memory_space<semaphore_mem>>) src(%133 : memref<1x128xf32, #tpu.memory_space<vmem>>) dst(%134 : memref<1x128xf32, #tpu.memory_space<vmem>>)
    %c3_i32_96 = arith.constant 3 : i32
    %c0_i32_97 = arith.constant 0 : i32
    %137 = tpu.memref_slice %arg3[%21, %c0_i32_97] : memref<64x128xf32, #tpu.memory_space<vmem>> -> memref<1x128xf32, #tpu.memory_space<vmem>>
    %c3_i32_98 = arith.constant 3 : i32
    %c0_i32_99 = arith.constant 0 : i32
    %138 = tpu.memref_slice %arg7[%c3_i32_98, %c0_i32_99] : memref<8x128xf32, #tpu.memory_space<vmem>> -> memref<1x128xf32, #tpu.memory_space<vmem>>
    %139 = tpu.memref_slice %arg9[%c3_i32_96] : memref<8x!tpu.dma_semaphore, #tpu.memory_space<semaphore_mem>> -> memref<1x!tpu.dma_semaphore, #tpu.memory_space<semaphore_mem>>
    %140 = tpu.memref_squeeze %139 : memref<1x!tpu.dma_semaphore, #tpu.memory_space<semaphore_mem>> -> memref<!tpu.dma_semaphore, #tpu.memory_space<semaphore_mem>>
    tpu.wait_dma2 semaphore(%140 : memref<!tpu.dma_semaphore, #tpu.memory_space<semaphore_mem>>) src(%137 : memref<1x128xf32, #tpu.memory_space<vmem>>) dst(%138 : memref<1x128xf32, #tpu.memory_space<vmem>>)
    %c3_i32_100 = arith.constant 3 : i32
    %c0_i32_101 = arith.constant 0 : i32
    %141 = tpu.memref_slice %arg4[%24, %c0_i32_101] : memref<64x128xf32, #tpu.memory_space<vmem>> -> memref<1x128xf32, #tpu.memory_space<vmem>>
    %c3_i32_102 = arith.constant 3 : i32
    %c0_i32_103 = arith.constant 0 : i32
    %142 = tpu.memref_slice %arg8[%c3_i32_102, %c0_i32_103] : memref<8x128xf32, #tpu.memory_space<vmem>> -> memref<1x128xf32, #tpu.memory_space<vmem>>
    %143 = tpu.memref_slice %arg10[%c3_i32_100] : memref<8x!tpu.dma_semaphore, #tpu.memory_space<semaphore_mem>> -> memref<1x!tpu.dma_semaphore, #tpu.memory_space<semaphore_mem>>
    %144 = tpu.memref_squeeze %143 : memref<1x!tpu.dma_semaphore, #tpu.memory_space<semaphore_mem>> -> memref<!tpu.dma_semaphore, #tpu.memory_space<semaphore_mem>>
    tpu.wait_dma2 semaphore(%144 : memref<!tpu.dma_semaphore, #tpu.memory_space<semaphore_mem>>) src(%141 : memref<1x128xf32, #tpu.memory_space<vmem>>) dst(%142 : memref<1x128xf32, #tpu.memory_space<vmem>>)
    %c4_i32_104 = arith.constant 4 : i32
    %c0_i32_105 = arith.constant 0 : i32
    %145 = tpu.memref_slice %arg3[%27, %c0_i32_105] : memref<64x128xf32, #tpu.memory_space<vmem>> -> memref<1x128xf32, #tpu.memory_space<vmem>>
    %c4_i32_106 = arith.constant 4 : i32
    %c0_i32_107 = arith.constant 0 : i32
    %146 = tpu.memref_slice %arg7[%c4_i32_106, %c0_i32_107] : memref<8x128xf32, #tpu.memory_space<vmem>> -> memref<1x128xf32, #tpu.memory_space<vmem>>
    %147 = tpu.memref_slice %arg9[%c4_i32_104] : memref<8x!tpu.dma_semaphore, #tpu.memory_space<semaphore_mem>> -> memref<1x!tpu.dma_semaphore, #tpu.memory_space<semaphore_mem>>
    %148 = tpu.memref_squeeze %147 : memref<1x!tpu.dma_semaphore, #tpu.memory_space<semaphore_mem>> -> memref<!tpu.dma_semaphore, #tpu.memory_space<semaphore_mem>>
    tpu.wait_dma2 semaphore(%148 : memref<!tpu.dma_semaphore, #tpu.memory_space<semaphore_mem>>) src(%145 : memref<1x128xf32, #tpu.memory_space<vmem>>) dst(%146 : memref<1x128xf32, #tpu.memory_space<vmem>>)
    %c4_i32_108 = arith.constant 4 : i32
    %c0_i32_109 = arith.constant 0 : i32
    %149 = tpu.memref_slice %arg4[%30, %c0_i32_109] : memref<64x128xf32, #tpu.memory_space<vmem>> -> memref<1x128xf32, #tpu.memory_space<vmem>>
    %c4_i32_110 = arith.constant 4 : i32
    %c0_i32_111 = arith.constant 0 : i32
    %150 = tpu.memref_slice %arg8[%c4_i32_110, %c0_i32_111] : memref<8x128xf32, #tpu.memory_space<vmem>> -> memref<1x128xf32, #tpu.memory_space<vmem>>
    %151 = tpu.memref_slice %arg10[%c4_i32_108] : memref<8x!tpu.dma_semaphore, #tpu.memory_space<semaphore_mem>> -> memref<1x!tpu.dma_semaphore, #tpu.memory_space<semaphore_mem>>
    %152 = tpu.memref_squeeze %151 : memref<1x!tpu.dma_semaphore, #tpu.memory_space<semaphore_mem>> -> memref<!tpu.dma_semaphore, #tpu.memory_space<semaphore_mem>>
    tpu.wait_dma2 semaphore(%152 : memref<!tpu.dma_semaphore, #tpu.memory_space<semaphore_mem>>) src(%149 : memref<1x128xf32, #tpu.memory_space<vmem>>) dst(%150 : memref<1x128xf32, #tpu.memory_space<vmem>>)
    %c5_i32_112 = arith.constant 5 : i32
    %c0_i32_113 = arith.constant 0 : i32
    %153 = tpu.memref_slice %arg3[%33, %c0_i32_113] : memref<64x128xf32, #tpu.memory_space<vmem>> -> memref<1x128xf32, #tpu.memory_space<vmem>>
    %c5_i32_114 = arith.constant 5 : i32
    %c0_i32_115 = arith.constant 0 : i32
    %154 = tpu.memref_slice %arg7[%c5_i32_114, %c0_i32_115] : memref<8x128xf32, #tpu.memory_space<vmem>> -> memref<1x128xf32, #tpu.memory_space<vmem>>
    %155 = tpu.memref_slice %arg9[%c5_i32_112] : memref<8x!tpu.dma_semaphore, #tpu.memory_space<semaphore_mem>> -> memref<1x!tpu.dma_semaphore, #tpu.memory_space<semaphore_mem>>
    %156 = tpu.memref_squeeze %155 : memref<1x!tpu.dma_semaphore, #tpu.memory_space<semaphore_mem>> -> memref<!tpu.dma_semaphore, #tpu.memory_space<semaphore_mem>>
    tpu.wait_dma2 semaphore(%156 : memref<!tpu.dma_semaphore, #tpu.memory_space<semaphore_mem>>) src(%153 : memref<1x128xf32, #tpu.memory_space<vmem>>) dst(%154 : memref<1x128xf32, #tpu.memory_space<vmem>>)
    %c5_i32_116 = arith.constant 5 : i32
    %c0_i32_117 = arith.constant 0 : i32
    %157 = tpu.memref_slice %arg4[%36, %c0_i32_117] : memref<64x128xf32, #tpu.memory_space<vmem>> -> memref<1x128xf32, #tpu.memory_space<vmem>>
    %c5_i32_118 = arith.constant 5 : i32
    %c0_i32_119 = arith.constant 0 : i32
    %158 = tpu.memref_slice %arg8[%c5_i32_118, %c0_i32_119] : memref<8x128xf32, #tpu.memory_space<vmem>> -> memref<1x128xf32, #tpu.memory_space<vmem>>
    %159 = tpu.memref_slice %arg10[%c5_i32_116] : memref<8x!tpu.dma_semaphore, #tpu.memory_space<semaphore_mem>> -> memref<1x!tpu.dma_semaphore, #tpu.memory_space<semaphore_mem>>
    %160 = tpu.memref_squeeze %159 : memref<1x!tpu.dma_semaphore, #tpu.memory_space<semaphore_mem>> -> memref<!tpu.dma_semaphore, #tpu.memory_space<semaphore_mem>>
    tpu.wait_dma2 semaphore(%160 : memref<!tpu.dma_semaphore, #tpu.memory_space<semaphore_mem>>) src(%157 : memref<1x128xf32, #tpu.memory_space<vmem>>) dst(%158 : memref<1x128xf32, #tpu.memory_space<vmem>>)
    %c6_i32_120 = arith.constant 6 : i32
    %c0_i32_121 = arith.constant 0 : i32
    %161 = tpu.memref_slice %arg3[%39, %c0_i32_121] : memref<64x128xf32, #tpu.memory_space<vmem>> -> memref<1x128xf32, #tpu.memory_space<vmem>>
    %c6_i32_122 = arith.constant 6 : i32
    %c0_i32_123 = arith.constant 0 : i32
    %162 = tpu.memref_slice %arg7[%c6_i32_122, %c0_i32_123] : memref<8x128xf32, #tpu.memory_space<vmem>> -> memref<1x128xf32, #tpu.memory_space<vmem>>
    %163 = tpu.memref_slice %arg9[%c6_i32_120] : memref<8x!tpu.dma_semaphore, #tpu.memory_space<semaphore_mem>> -> memref<1x!tpu.dma_semaphore, #tpu.memory_space<semaphore_mem>>
    %164 = tpu.memref_squeeze %163 : memref<1x!tpu.dma_semaphore, #tpu.memory_space<semaphore_mem>> -> memref<!tpu.dma_semaphore, #tpu.memory_space<semaphore_mem>>
    tpu.wait_dma2 semaphore(%164 : memref<!tpu.dma_semaphore, #tpu.memory_space<semaphore_mem>>) src(%161 : memref<1x128xf32, #tpu.memory_space<vmem>>) dst(%162 : memref<1x128xf32, #tpu.memory_space<vmem>>)
    %c6_i32_124 = arith.constant 6 : i32
    %c0_i32_125 = arith.constant 0 : i32
    %165 = tpu.memref_slice %arg4[%42, %c0_i32_125] : memref<64x128xf32, #tpu.memory_space<vmem>> -> memref<1x128xf32, #tpu.memory_space<vmem>>
    %c6_i32_126 = arith.constant 6 : i32
    %c0_i32_127 = arith.constant 0 : i32
    %166 = tpu.memref_slice %arg8[%c6_i32_126, %c0_i32_127] : memref<8x128xf32, #tpu.memory_space<vmem>> -> memref<1x128xf32, #tpu.memory_space<vmem>>
    %167 = tpu.memref_slice %arg10[%c6_i32_124] : memref<8x!tpu.dma_semaphore, #tpu.memory_space<semaphore_mem>> -> memref<1x!tpu.dma_semaphore, #tpu.memory_space<semaphore_mem>>
    %168 = tpu.memref_squeeze %167 : memref<1x!tpu.dma_semaphore, #tpu.memory_space<semaphore_mem>> -> memref<!tpu.dma_semaphore, #tpu.memory_space<semaphore_mem>>
    tpu.wait_dma2 semaphore(%168 : memref<!tpu.dma_semaphore, #tpu.memory_space<semaphore_mem>>) src(%165 : memref<1x128xf32, #tpu.memory_space<vmem>>) dst(%166 : memref<1x128xf32, #tpu.memory_space<vmem>>)
    %c7_i32_128 = arith.constant 7 : i32
    %c0_i32_129 = arith.constant 0 : i32
    %169 = tpu.memref_slice %arg3[%45, %c0_i32_129] : memref<64x128xf32, #tpu.memory_space<vmem>> -> memref<1x128xf32, #tpu.memory_space<vmem>>
    %c7_i32_130 = arith.constant 7 : i32
    %c0_i32_131 = arith.constant 0 : i32
    %170 = tpu.memref_slice %arg7[%c7_i32_130, %c0_i32_131] : memref<8x128xf32, #tpu.memory_space<vmem>> -> memref<1x128xf32, #tpu.memory_space<vmem>>
    %171 = tpu.memref_slice %arg9[%c7_i32_128] : memref<8x!tpu.dma_semaphore, #tpu.memory_space<semaphore_mem>> -> memref<1x!tpu.dma_semaphore, #tpu.memory_space<semaphore_mem>>
    %172 = tpu.memref_squeeze %171 : memref<1x!tpu.dma_semaphore, #tpu.memory_space<semaphore_mem>> -> memref<!tpu.dma_semaphore, #tpu.memory_space<semaphore_mem>>
    tpu.wait_dma2 semaphore(%172 : memref<!tpu.dma_semaphore, #tpu.memory_space<semaphore_mem>>) src(%169 : memref<1x128xf32, #tpu.memory_space<vmem>>) dst(%170 : memref<1x128xf32, #tpu.memory_space<vmem>>)
    %c7_i32_132 = arith.constant 7 : i32
    %c0_i32_133 = arith.constant 0 : i32
    %173 = tpu.memref_slice %arg4[%48, %c0_i32_133] : memref<64x128xf32, #tpu.memory_space<vmem>> -> memref<1x128xf32, #tpu.memory_space<vmem>>
    %c7_i32_134 = arith.constant 7 : i32
    %c0_i32_135 = arith.constant 0 : i32
    %174 = tpu.memref_slice %arg8[%c7_i32_134, %c0_i32_135] : memref<8x128xf32, #tpu.memory_space<vmem>> -> memref<1x128xf32, #tpu.memory_space<vmem>>
    %175 = tpu.memref_slice %arg10[%c7_i32_132] : memref<8x!tpu.dma_semaphore, #tpu.memory_space<semaphore_mem>> -> memref<1x!tpu.dma_semaphore, #tpu.memory_space<semaphore_mem>>
    %176 = tpu.memref_squeeze %175 : memref<1x!tpu.dma_semaphore, #tpu.memory_space<semaphore_mem>> -> memref<!tpu.dma_semaphore, #tpu.memory_space<semaphore_mem>>
    tpu.wait_dma2 semaphore(%176 : memref<!tpu.dma_semaphore, #tpu.memory_space<semaphore_mem>>) src(%173 : memref<1x128xf32, #tpu.memory_space<vmem>>) dst(%174 : memref<1x128xf32, #tpu.memory_space<vmem>>)
    %c0 = arith.constant 0 : index
    %c0_136 = arith.constant 0 : index
    %177 = vector.load %arg7[%c0, %c0_136] : memref<8x128xf32, #tpu.memory_space<vmem>>, vector<8x128xf32>
    %c0_137 = arith.constant 0 : index
    %c0_138 = arith.constant 0 : index
    %178 = vector.load %arg5[%c0_137, %c0_138] : memref<8x128xf32, #tpu.memory_space<vmem>>, vector<8x128xf32>
    tpu.vector_store %arg5[%c0_137, %c0_138], %177 {strides = array<i32>} : memref<8x128xf32, #tpu.memory_space<vmem>>, vector<8x128xf32>,
    %c0_139 = arith.constant 0 : index
    %c0_140 = arith.constant 0 : index
    %179 = vector.load %arg8[%c0_139, %c0_140] : memref<8x128xf32, #tpu.memory_space<vmem>>, vector<8x128xf32>
    %c0_141 = arith.constant 0 : index
    %c0_142 = arith.constant 0 : index
    %180 = vector.load %arg6[%c0_141, %c0_142] : memref<8x128xf32, #tpu.memory_space<vmem>>, vector<8x128xf32>
    tpu.vector_store %arg6[%c0_141, %c0_142], %179 {strides = array<i32>} : memref<8x128xf32, #tpu.memory_space<vmem>>, vector<8x128xf32>,
    return
  }
  func.func @transform_0(%arg0: i32, %arg1: memref<32xi32, #tpu.memory_space<smem>>, %arg2: memref<32xi32, #tpu.memory_space<smem>>) -> (i32, i32) {
    %c0_i32 = arith.constant 0 : i32
    %c0_i32_0 = arith.constant 0 : i32
    %c0_i32_1 = arith.constant 0 : i32
    return %c0_i32, %c0_i32_0 : i32, i32
  }
  func.func @transform_1(%arg0: i32, %arg1: memref<32xi32, #tpu.memory_space<smem>>, %arg2: memref<32xi32, #tpu.memory_space<smem>>) -> (i32, i32) {
    %c0_i32 = arith.constant 0 : i32
    %c0_i32_0 = arith.constant 0 : i32
    %c0_i32_1 = arith.constant 0 : i32
    return %c0_i32, %c0_i32_0 : i32, i32
  }
  func.func @transform_2(%arg0: i32, %arg1: memref<32xi32, #tpu.memory_space<smem>>, %arg2: memref<32xi32, #tpu.memory_space<smem>>) -> (i32, i32) {
    %c0_i32 = arith.constant 0 : i32
    %c0_i32_0 = arith.constant 0 : i32
    return %arg0, %c0_i32 : i32, i32
  }
  func.func @transform_3(%arg0: i32, %arg1: memref<32xi32, #tpu.memory_space<smem>>, %arg2: memref<32xi32, #tpu.memory_space<smem>>) -> (i32, i32) {
    %c0_i32 = arith.constant 0 : i32
    %c0_i32_0 = arith.constant 0 : i32
    return %arg0, %c0_i32 : i32, i32
  }
}

</mosaic_0001>

<llo_original>
// kernel: tpu_custom_call.1
$region0: #{tpu_custom_call.1}
  #allocation0 [shape = 'u32[]', space=smem, size = 0x4, offset = 0x4, fixed_abs, tag = 'smem constant byte address 0x4 - core index']
  #allocation1 [shape = 'u32[144,128]{1,0:T(1,128)}', space=vmem, size = 0x12000, scoped, tag = 'internal scratch']
  #allocation2 [shape = 'f32[8,128]{1,0:T(8,128)}', space=vmem, size = 0x1000, scoped, tag = 'scratch operand']
  #allocation3 [shape = 'f32[8,128]{1,0:T(8,128)}', space=vmem, size = 0x1000, scoped, tag = 'scratch operand']
  #allocation4 [shape = 's32[8]{0}', space=sflag, size = 0x20, scoped, tag = 'scratch operand']
  #allocation5 [shape = 's32[8]{0}', space=sflag, size = 0x20, scoped, tag = 'scratch operand']
  #allocation6 [shape = 's32[1]{0}', space=sflag, size = 0x4, scoped, tag = 'scoped memory for tpu_custom_call.1']
  #allocation7 [shape = 'u8[512]{0}', space=smem, size = 0x200, scoped, tag = 'prefetched SMEM operand 0']
  #allocation8 [shape = 'u8[512]{0}', space=smem, size = 0x200, scoped, tag = 'prefetched SMEM operand 1']
  #allocation17 [shape = 's32[]', space=sflag, size = 0x4, offset = 0, fixed_abs, tag = 'sflag constant byte address 0x0 - dummy sync flag']
  #allocation18 [shape = 's32[]', space=sflag, size = 0x4, offset = 0, fixed_abs, tag = 'sflag constant byte address 0x0 - dummy sync flag']
  #allocation19 [shape = 's32[]', space=sflag, size = 0x4, offset = 0, fixed_abs, tag = 'sflag constant byte address 0x0 - dummy sync flag']
  #allocation20 [shape = 's32[]', space=sflag, size = 0x4, offset = 0, fixed_abs, tag = 'sflag constant byte address 0x0 - dummy sync flag']
  #allocation21 [shape = 's32[]', space=sflag, size = 0x4, offset = 0, fixed_abs, tag = 'sflag constant byte address 0x0 - dummy sync flag']
  #allocation22 [shape = 's32[]', space=sflag, size = 0x4, offset = 0, fixed_abs, tag = 'sflag constant byte address 0x0 - dummy sync flag']
  #allocation23 [shape = 's32[]', space=sflag, size = 0x4, offset = 0, fixed_abs, tag = 'sflag constant byte address 0x0 - dummy sync flag']
  #allocation24 [shape = 's32[]', space=sflag, size = 0x4, offset = 0, fixed_abs, tag = 'sflag constant byte address 0x0 - dummy sync flag']
  #allocation25 [shape = 's32[]', space=sflag, size = 0x4, offset = 0, fixed_abs, tag = 'sflag constant byte address 0x0 - dummy sync flag']
  #allocation26 [shape = 's32[]', space=sflag, size = 0x4, offset = 0, fixed_abs, tag = 'sflag constant byte address 0x0 - dummy sync flag']
  #allocation27 [shape = 's32[]', space=sflag, size = 0x4, offset = 0, fixed_abs, tag = 'sflag constant byte address 0x0 - dummy sync flag']
  #allocation28 [shape = 's32[]', space=sflag, size = 0x4, offset = 0, fixed_abs, tag = 'sflag constant byte address 0x0 - dummy sync flag']
  #allocation29 [shape = 's32[]', space=sflag, size = 0x4, offset = 0, fixed_abs, tag = 'sflag constant byte address 0x0 - dummy sync flag']
  #allocation30 [shape = 's32[]', space=sflag, size = 0x4, offset = 0, fixed_abs, tag = 'sflag constant byte address 0x0 - dummy sync flag']
  #allocation31 [shape = 's32[]', space=sflag, size = 0x4, offset = 0, fixed_abs, tag = 'sflag constant byte address 0x0 - dummy sync flag']
  #allocation32 [shape = 's32[]', space=sflag, size = 0x4, offset = 0, fixed_abs, tag = 'sflag constant byte address 0x0 - dummy sync flag']
  %s0 = inlined_call_operand.hbm [shape: s32[32], index: 0, kind: input, shape index: {}]
  %s1 = inlined_call_operand.vmem [shape: s32[32], index: 1, kind: input, shape index: {}]
  %s2 = inlined_call_operand.hbm [shape: f32[64,128], index: 2, kind: input, shape index: {}]
  %s3 = inlined_call_operand.hbm [shape: f32[64,128], index: 3, kind: input, shape index: {}]
  %s4 = inlined_call_operand.hbm [shape: f32[32,128], index: 4, kind: output, shape index: {0}]
  %s5 = inlined_call_operand.hbm [shape: f32[32,128], index: 5, kind: output, shape index: {1}]
  %6 = xla_tuple %s4, %s5
  %s7 = sld [smem:[#allocation0]]
  $region537: #{tpu_custom_call.1} parent=0
    _
  %s9 = ssub.s32 1, %s7
  %s10 = scalar_select 0, %s9, %s7
  %12 = dma.hbm_to_smem %s0, 16, [#allocation7], [#allocation6]
  %s13 = sshll.u32 %s1, 4
  %s14 = int_to_ptr.vmem [resolvable:$true] %s13
  %16 = dma.vmem_to_smem %s14, 16, [#allocation8], [#allocation6]
  %17 = dma.done [#allocation6], 32
  %18 = sfence
  $region1: #{tpu_custom_call.1} parent=0
    #allocation9 [shape = 'u8[32768]{0}', space=vmem, size = 0x8000, scoped, tag = 'input window, operand 2, single buffered']
    #allocation10 [shape = 's32[2]{0}', space=sflag, size = 0x8, scoped, tag = 'scoped memory for tpu_custom_call.1']
    #allocation11 [shape = 's32[2]{0}', space=sflag, size = 0x8, scoped, tag = 'scoped memory for tpu_custom_call.1']
    #allocation12 [shape = 'u8[32768]{0}', space=vmem, size = 0x8000, scoped, tag = 'input window, operand 3, single buffered']
    #allocation13 [shape = 's32[1]{0}', space=sflag, size = 0x4, scoped, tag = 'scoped memory for tpu_custom_call.1']
    #allocation14 [shape = 'u8[8192]{0}', space=vmem, size = 0x2000, scoped, tag = 'output window, operand 0']
    #allocation15 [shape = 'u8[8192]{0}', space=vmem, size = 0x2000, scoped, tag = 'output window, operand 1']
    #allocation16 [shape = 's32[2]{0}', space=sflag, size = 0x8, scoped, tag = 'scoped memory for tpu_custom_call.1']
    %19 = vsyncpa [#allocation10], 0
    %20 = vsyncpa [#allocation13], 0
    %21 = vsyncpa [#allocation11], 0
    %s22 = scalar_lea.sflag [#allocation11], 1
    %23 = vsyncpa %s22, 0
    %24 = vsyncpa [#allocation16], 0
    %s25 = scalar_lea.sflag [#allocation16], 1
    %26 = vsyncpa %s25, 0
    loop: start=0, step=1, limit=6
    $region2: #{tpu_custom_call.1} parent=1 // loop_pre_header
      _
    $region3: #{tpu_custom_call.1} parent=1 // loop_header
      %s28 = sphi 0, %s32
      %p29 = scmp.ge.s32.totalorder %s28, 6
      %s36 = sphi 0, %s36
      %s38 = sphi 0, %s36
      %s39 = sphi 0, %s38
      %s53 = sphi 0, %s39
      %s57 = sphi 0, %s57
      %s59 = sphi 0, %s57
      %s60 = sphi 0, %s59
      %s74 = sphi 0, %s60
      %s80 = sphi 0, %s82
      %s83 = sphi 0, %s80
      %s84 = sphi 0, %s83
      %s100 = sphi 0, %s84
      %s106 = sphi 0, %s108
      %s109 = sphi 0, %s106
      %s110 = sphi 0, %s109
      %s126 = sphi 0, %s110
    $region4: #{tpu_custom_call.1} parent=1 // loop_header_branch
      %31 = sbr.rel (%p29) target = $region8
    $region5: #{tpu_custom_call.1} parent=1 // loop_body
      %s33 = ssub.s32 %s28, 1
      %s34 = ssub.s32 %s28, 2
      %s35 = sadd.s32 %s28, 1
      %s37 = sadd.s32 %s36, 1
      %p40 = scmp.eq.s32.totalorder %s28, 3
      %p41 = scmp.ne.s32.totalorder %s36, %s38
      %p42 = scmp.eq.s32.totalorder %s28, 0
      %p43 = por %p41, %p42
      %p44 = scmp.ne.s32.totalorder %s36, %s38
      %p45 = scmp.eq.s32.totalorder %s33, 3
      %p46 = por %p44, %p45
      %p47 = scmp.ne.s32.totalorder %s38, %s39
      %p48 = scmp.eq.s32.totalorder %s33, 0
      %p49 = por %p47, %p48
      %p50 = scmp.ne.s32.totalorder %s38, %s39
      %p51 = scmp.eq.s32.totalorder %s34, 3
      %p52 = por %p50, %p51
      %p54 = scmp.ne.s32.totalorder %s39, %s53
      %p55 = scmp.eq.s32.totalorder %s34, 0
      %p56 = por %p54, %p55
      %s58 = sadd.s32 %s57, 1
      %p61 = scmp.eq.s32.totalorder %s28, 3
      %p62 = scmp.ne.s32.totalorder %s57, %s59
      %p63 = scmp.eq.s32.totalorder %s28, 0
      %p64 = por %p62, %p63
      %p65 = scmp.ne.s32.totalorder %s57, %s59
      %p66 = scmp.eq.s32.totalorder %s33, 3
      %p67 = por %p65, %p66
      %p68 = scmp.ne.s32.totalorder %s59, %s60
      %p69 = scmp.eq.s32.totalorder %s33, 0
      %p70 = por %p68, %p69
      %p71 = scmp.ne.s32.totalorder %s59, %s60
      %p72 = scmp.eq.s32.totalorder %s34, 3
      %p73 = por %p71, %p72
      %p75 = scmp.ne.s32.totalorder %s60, %s74
      %p76 = scmp.eq.s32.totalorder %s34, 0
      %p77 = por %p75, %p76
      %s78 = ssub.s32 %s28, %s35
      %p79 = scmp.eq.s32.totalorder %s78, 0
      %s81 = sadd.s32 %s80, 1
      %s82 = scalar_select %p79, %s80, %s81
      %p85 = pneg %p79
      %p86 = scmp.eq.s32.totalorder %s28, 3
      %p87 = por %p85, %p86
      %p88 = scmp.ne.s32.totalorder %s80, %s83
      %p89 = scmp.eq.s32.totalorder %s28, 0
      %p90 = por %p88, %p89
      %p91 = scmp.ne.s32.totalorder %s80, %s83
      %p92 = scmp.eq.s32.totalorder %s33, 3
      %p93 = por %p91, %p92
      %p94 = scmp.ne.s32.totalorder %s83, %s84
      %p95 = scmp.eq.s32.totalorder %s33, 0
      %p96 = por %p94, %p95
      %p97 = scmp.ne.s32.totalorder %s83, %s84
      %p98 = scmp.eq.s32.totalorder %s34, 3
      %p99 = por %p97, %p98
      %p101 = scmp.ne.s32.totalorder %s84, %s100
      %p102 = scmp.eq.s32.totalorder %s34, 0
      %p103 = por %p101, %p102
      %s104 = ssub.s32 %s28, %s35
      %p105 = scmp.eq.s32.totalorder %s104, 0
      %s107 = sadd.s32 %s106, 1
      %s108 = scalar_select %p105, %s106, %s107
      %p111 = pneg %p105
      %p112 = scmp.eq.s32.totalorder %s28, 3
      %p113 = por %p111, %p112
      %p114 = scmp.ne.s32.totalorder %s106, %s109
      %p115 = scmp.eq.s32.totalorder %s28, 0
      %p116 = por %p114, %p115
      %p117 = scmp.ne.s32.totalorder %s106, %s109
      %p118 = scmp.eq.s32.totalorder %s33, 3
      %p119 = por %p117, %p118
      %p120 = scmp.ne.s32.totalorder %s109, %s110
      %p121 = scmp.eq.s32.totalorder %s33, 0
      %p122 = por %p120, %p121
      %p123 = scmp.ne.s32.totalorder %s109, %s110
      %p124 = scmp.eq.s32.totalorder %s34, 3
      %p125 = por %p123, %p124
      %p127 = scmp.ne.s32.totalorder %s110, %s126
      %p128 = scmp.eq.s32.totalorder %s34, 0
      %p129 = por %p127, %p128
      %p130 = scmp.le.s32.totalorder 1, %s28
      %p131 = scmp.lt.s32.totalorder %s28, 5
      %p132 = pnand %p130, %p131
      %p133 = pneg %p132
      // Predicated region
      $region9: #{tpu_custom_call.1} parent=5 // pred_check
        _
      $region10: #{tpu_custom_call.1} parent=5 // pred_check_branch
        %135 = sbr.rel (%p132) target = $region12
      $region11: #{tpu_custom_call.1} parent=5 // pred_region
        %s136 = ssub.s32 %s28, 1
        // Predicated region
        $region13: #{tpu_custom_call.1} parent=11 // pred_check
          %p137 = pneg %p49
        $region14: #{tpu_custom_call.1} parent=11 // pred_check_branch
          %139 = sbr.rel (%p137) target = $region16
        $region15: #{tpu_custom_call.1} parent=11 // pred_region
          %s141 = ssub.s32 1024, 1024
          %142 = vsyncadd [#allocation10], %s141
          %s143 = sshll.u32 [#allocation9], 4
          %s144 = int_to_ptr.vmem [resolvable:$true] %s143
          %149 = dma.hbm_to_vmem [thread:$0]  %s2, 1024, %s144, [#allocation10], 128, 128, 8
        $region16: #{tpu_custom_call.1} parent=11 // pred_fallthru
          _
        // Predicated region
        $region17: #{tpu_custom_call.1} parent=11 // pred_check
          %p150 = pneg %p70
        $region18: #{tpu_custom_call.1} parent=11 // pred_check_branch
          %152 = sbr.rel (%p150) target = $region20
        $region19: #{tpu_custom_call.1} parent=11 // pred_region
          %s154 = ssub.s32 1024, 1024
          %155 = vsyncadd [#allocation13], %s154
          %s156 = sshll.u32 [#allocation12], 4
          %s157 = int_to_ptr.vmem [resolvable:$true] %s156
          %162 = dma.hbm_to_vmem [thread:$0]  %s3, 1024, %s157, [#allocation13], 128, 128, 8
        $region20: #{tpu_custom_call.1} parent=11 // pred_fallthru
          _
      $region12: #{tpu_custom_call.1} parent=5 // pred_fallthru
        _
      %p163 = scmp.lt.s32.totalorder %s28, 4
      // Predicated region
      $region21: #{tpu_custom_call.1} parent=5 // pred_check
        %p164 = pneg %p163
      $region22: #{tpu_custom_call.1} parent=5 // pred_check_branch
        %166 = sbr.rel (%p164) target = $region24
      $region23: #{tpu_custom_call.1} parent=5 // pred_region
        _
      $region24: #{tpu_custom_call.1} parent=5 // pred_fallthru
        _
      %p167 = scmp.le.s32.totalorder 1, %s28
      %p168 = scmp.lt.s32.totalorder %s28, 5
      %p169 = pnand %p167, %p168
      %p170 = pneg %p169
      // Predicated region
      $region25: #{tpu_custom_call.1} parent=5 // pred_check
        _
      $region26: #{tpu_custom_call.1} parent=5 // pred_check_branch
        %172 = sbr.rel (%p169) target = $region28
      $region27: #{tpu_custom_call.1} parent=5 // pred_region
        %s173 = ssub.s32 %s28, 1
        // Predicated region
        $region29: #{tpu_custom_call.1} parent=27 // pred_check
          %p174 = pneg %p49
        $region30: #{tpu_custom_call.1} parent=27 // pred_check_branch
          %176 = sbr.rel (%p174) target = $region32
        $region31: #{tpu_custom_call.1} parent=27 // pred_region
          %177 = dma.done [#allocation10], 1024
        $region32: #{tpu_custom_call.1} parent=27 // pred_fallthru
          _
        // Predicated region
        $region33: #{tpu_custom_call.1} parent=27 // pred_check
          %p178 = pneg %p70
        $region34: #{tpu_custom_call.1} parent=27 // pred_check_branch
          %180 = sbr.rel (%p178) target = $region36
        $region35: #{tpu_custom_call.1} parent=27 // pred_region
          %181 = dma.done [#allocation13], 1024
        $region36: #{tpu_custom_call.1} parent=27 // pred_fallthru
          _
        %p182 = pneg %p49
        %p183 = pneg %p46
        %p184 = pneg %p70
        %p185 = pneg %p67
        %p186 = pneg %p96
        %p187 = pneg %p93
        %s188 = sand.u32 %s83, 1
        %s189 = scalar_lea.sflag [#allocation11], %s188
        %s190 = sand.u32 %s83, 1
        %s191 = smul.addr %s190, 8
        %s192 = scalar_lea.vmem [#allocation14], %s191
        %p193 = pneg %p122
        %p194 = pneg %p119
        %s195 = sand.u32 %s109, 1
        %s196 = scalar_lea.sflag [#allocation16], %s195
        %s197 = sand.u32 %s109, 1
        %s198 = smul.addr %s197, 8
        %s199 = scalar_lea.vmem [#allocation15], %s198
        %s200 = smul.u32 %s33, 8
        %s201 = sld [smem:[#allocation7 + %s200]]
        %s202 = sld [smem:[#allocation8 + %s200]]
        %s203 = sadd.s32 %s200, 1
        %s204 = sld [smem:[#allocation7 + %s203]]
        %s205 = sld [smem:[#allocation8 + %s203]]
        %s206 = sadd.s32 %s200, 2
        %s207 = sld [smem:[#allocation7 + %s206]]
        %s208 = sld [smem:[#allocation8 + %s206]]
        %s209 = sadd.s32 %s200, 3
        %s210 = sld [smem:[#allocation7 + %s209]]
        %s211 = sld [smem:[#allocation8 + %s209]]
        %s212 = sadd.s32 %s200, 4
        %s213 = sld [smem:[#allocation7 + %s212]]
        %s214 = sld [smem:[#allocation8 + %s212]]
        %s215 = sadd.s32 %s200, 5
        %s216 = sld [smem:[#allocation7 + %s215]]
        %s217 = sld [smem:[#allocation8 + %s215]]
        %s218 = sadd.s32 %s200, 6
        %s219 = sld [smem:[#allocation7 + %s218]]
        %s220 = sld [smem:[#allocation8 + %s218]]
        %s221 = sadd.s32 %s200, 7
        %s222 = sld [smem:[#allocation7 + %s221]]
        %s223 = sld [smem:[#allocation8 + %s221]]
        %s224 = scalar_lea.vmem [#allocation9], %s201
        %p226 = scmp.lt.u32.totalorder 1, 8
        %p227 = pneg %p226
        // Predicated region
        $region37: #{tpu_custom_call.1} parent=27 // pred_check
          _
        $region38: #{tpu_custom_call.1} parent=27 // pred_check_branch
          %229 = sbr.rel (%p226) target = $region40
        $region39: #{tpu_custom_call.1} parent=27 // pred_region
          %s244 = sand.u32 1, 7
          %p245 = scmp.eq.s32.totalorder %s244, 0
          %p246 = pneg %p245
          // Predicated region
          $region52: #{tpu_custom_call.1} parent=39 // pred_check
            _
          $region53: #{tpu_custom_call.1} parent=39 // pred_check_branch
            %248 = sbr.rel (%p245) target = $region55
          $region54: #{tpu_custom_call.1} parent=39 // pred_region
            %s249 = sand.u32 1, 7
            %s250 = ssub.s32 1, %s249
            %s251 = scalar_lea.vmem %s224, %s250 [#allocation9]
            %s252 = ssub.s32 1, %s249
            %s253 = scalar_lea.vmem [#allocation2], %s252
            %s254 = sshllo.u32 0, %s249
            loop: start=0, step=1, limit=1
            $region56: #{tpu_custom_call.1} parent=54 // loop_pre_header
              _
            $region57: #{tpu_custom_call.1} parent=54 // loop_header
              %s256 = sphi 0, %s260
              %p257 = scmp.ge.s32.totalorder %s256, 1
              %s261 = sphi %s251, %s251
              %s262 = sphi %s253, %s253
            $region58: #{tpu_custom_call.1} parent=54 // loop_header_branch
              %259 = sbr.rel (%p257) target = $region62
            $region59: #{tpu_custom_call.1} parent=54 // loop_body
              %v263 = vld [vmem:[%s261] sm:%s254]
              %264 = vst [vmem:[%s262] sm:%s254] %v263
            $region60: #{tpu_custom_call.1} parent=54 // loop_footer
              %s260 = sadd.s32 1, %s256
            $region61: #{tpu_custom_call.1} parent=54 // loop_footer_branch
              %255 = sbr.rel target = $region57
            $region62: #{tpu_custom_call.1} parent=54 // loop_exit
              _
          $region55: #{tpu_custom_call.1} parent=39 // pred_fallthru
            _
        $region40: #{tpu_custom_call.1} parent=27 // pred_fallthru
          _
        // Predicated region
        $region41: #{tpu_custom_call.1} parent=27 // pred_check
          %p230 = pneg %p226
        $region42: #{tpu_custom_call.1} parent=27 // pred_check_branch
          %232 = sbr.rel (%p230) target = $region44
        $region43: #{tpu_custom_call.1} parent=27 // pred_region
          %s233 = sshllo.u32 0, 1
          loop: start=0, step=1, limit=1
          $region45: #{tpu_custom_call.1} parent=43 // loop_pre_header
            _
          $region46: #{tpu_custom_call.1} parent=43 // loop_header
            %s235 = sphi 0, %s239
            %p236 = scmp.ge.s32.totalorder %s235, 1
            %s240 = sphi %s224, %s224
            %s241 = sphi [#allocation2], [#allocation2]
          $region47: #{tpu_custom_call.1} parent=43 // loop_header_branch
            %238 = sbr.rel (%p236) target = $region51
          $region48: #{tpu_custom_call.1} parent=43 // loop_body
            %v242 = vld [vmem:[%s240] sm:%s233]
            %243 = vst [vmem:[%s241] sm:%s233] %v242
          $region49: #{tpu_custom_call.1} parent=43 // loop_footer
            %s239 = sadd.s32 1, %s235
          $region50: #{tpu_custom_call.1} parent=43 // loop_footer_branch
            %234 = sbr.rel target = $region46
          $region51: #{tpu_custom_call.1} parent=43 // loop_exit
            _
        $region44: #{tpu_custom_call.1} parent=27 // pred_fallthru
          _
        // Predicated region
        $region63: #{tpu_custom_call.1} parent=27 // pred_check
          _
        $region64: #{tpu_custom_call.1} parent=27 // pred_check_branch
          %267 = sbr.rel (0) target = $region66
        $region65: #{tpu_custom_call.1} parent=27 // pred_region
          %268 = vsyncadd [#allocation4], 16
        $region66: #{tpu_custom_call.1} parent=27 // pred_fallthru
          _
        %s269 = scalar_lea.vmem [#allocation12], %s202
        %p271 = scmp.lt.u32.totalorder 1, 8
        %p272 = pneg %p271
        // Predicated region
        $region67: #{tpu_custom_call.1} parent=27 // pred_check
          _
        $region68: #{tpu_custom_call.1} parent=27 // pred_check_branch
          %274 = sbr.rel (%p271) target = $region70
        $region69: #{tpu_custom_call.1} parent=27 // pred_region
          %s289 = sand.u32 1, 7
          %p290 = scmp.eq.s32.totalorder %s289, 0
          %p291 = pneg %p290
          // Predicated region
          $region82: #{tpu_custom_call.1} parent=69 // pred_check
            _
          $region83: #{tpu_custom_call.1} parent=69 // pred_check_branch
            %293 = sbr.rel (%p290) target = $region85
          $region84: #{tpu_custom_call.1} parent=69 // pred_region
            %s294 = sand.u32 1, 7
            %s295 = ssub.s32 1, %s294
            %s296 = scalar_lea.vmem %s269, %s295 [#allocation12]
            %s297 = ssub.s32 1, %s294
            %s298 = scalar_lea.vmem [#allocation3], %s297
            %s299 = sshllo.u32 0, %s294
            loop: start=0, step=1, limit=1
            $region86: #{tpu_custom_call.1} parent=84 // loop_pre_header
              _
            $region87: #{tpu_custom_call.1} parent=84 // loop_header
              %s301 = sphi 0, %s305
              %p302 = scmp.ge.s32.totalorder %s301, 1
              %s306 = sphi %s296, %s296
              %s307 = sphi %s298, %s298
            $region88: #{tpu_custom_call.1} parent=84 // loop_header_branch
              %304 = sbr.rel (%p302) target = $region92
            $region89: #{tpu_custom_call.1} parent=84 // loop_body
              %v308 = vld [vmem:[%s306] sm:%s299]
              %309 = vst [vmem:[%s307] sm:%s299] %v308
            $region90: #{tpu_custom_call.1} parent=84 // loop_footer
              %s305 = sadd.s32 1, %s301
            $region91: #{tpu_custom_call.1} parent=84 // loop_footer_branch
              %300 = sbr.rel target = $region87
            $region92: #{tpu_custom_call.1} parent=84 // loop_exit
              _
          $region85: #{tpu_custom_call.1} parent=69 // pred_fallthru
            _
        $region70: #{tpu_custom_call.1} parent=27 // pred_fallthru
          _
        // Predicated region
        $region71: #{tpu_custom_call.1} parent=27 // pred_check
          %p275 = pneg %p271
        $region72: #{tpu_custom_call.1} parent=27 // pred_check_branch
          %277 = sbr.rel (%p275) target = $region74
        $region73: #{tpu_custom_call.1} parent=27 // pred_region
          %s278 = sshllo.u32 0, 1
          loop: start=0, step=1, limit=1
          $region75: #{tpu_custom_call.1} parent=73 // loop_pre_header
            _
          $region76: #{tpu_custom_call.1} parent=73 // loop_header
            %s280 = sphi 0, %s284
            %p281 = scmp.ge.s32.totalorder %s280, 1
            %s285 = sphi %s269, %s269
            %s286 = sphi [#allocation3], [#allocation3]
          $region77: #{tpu_custom_call.1} parent=73 // loop_header_branch
            %283 = sbr.rel (%p281) target = $region81
          $region78: #{tpu_custom_call.1} parent=73 // loop_body
            %v287 = vld [vmem:[%s285] sm:%s278]
            %288 = vst [vmem:[%s286] sm:%s278] %v287
          $region79: #{tpu_custom_call.1} parent=73 // loop_footer
            %s284 = sadd.s32 1, %s280
          $region80: #{tpu_custom_call.1} parent=73 // loop_footer_branch
            %279 = sbr.rel target = $region76
          $region81: #{tpu_custom_call.1} parent=73 // loop_exit
            _
        $region74: #{tpu_custom_call.1} parent=27 // pred_fallthru
          _
        // Predicated region
        $region93: #{tpu_custom_call.1} parent=27 // pred_check
          _
        $region94: #{tpu_custom_call.1} parent=27 // pred_check_branch
          %312 = sbr.rel (0) target = $region96
        $region95: #{tpu_custom_call.1} parent=27 // pred_region
          %313 = vsyncadd [#allocation5], 16
        $region96: #{tpu_custom_call.1} parent=27 // pred_fallthru
          _
        %s314 = scalar_lea.vmem [#allocation9], %s204
        %s315 = scalar_lea.vmem [#allocation2], 1
        %s316 = scalar_lea.sflag [#allocation4], 1
        %p318 = scmp.lt.u32.totalorder 1, 8
        %p319 = pneg %p318
        // Predicated region
        $region97: #{tpu_custom_call.1} parent=27 // pred_check
          _
        $region98: #{tpu_custom_call.1} parent=27 // pred_check_branch
          %321 = sbr.rel (%p318) target = $region100
        $region99: #{tpu_custom_call.1} parent=27 // pred_region
          %s336 = sand.u32 1, 7
          %p337 = scmp.eq.s32.totalorder %s336, 0
          %p338 = pneg %p337
          // Predicated region
          $region112: #{tpu_custom_call.1} parent=99 // pred_check
            _
          $region113: #{tpu_custom_call.1} parent=99 // pred_check_branch
            %340 = sbr.rel (%p337) target = $region115
          $region114: #{tpu_custom_call.1} parent=99 // pred_region
            %s341 = sand.u32 1, 7
            %s342 = ssub.s32 1, %s341
            %s343 = scalar_lea.vmem %s314, %s342 [#allocation9]
            %s344 = ssub.s32 1, %s341
            %s345 = scalar_lea.vmem %s315, %s344 [#allocation2]
            %s346 = sshllo.u32 0, %s341
            loop: start=0, step=1, limit=1
            $region116: #{tpu_custom_call.1} parent=114 // loop_pre_header
              _
            $region117: #{tpu_custom_call.1} parent=114 // loop_header
              %s348 = sphi 0, %s352
              %p349 = scmp.ge.s32.totalorder %s348, 1
              %s353 = sphi %s343, %s343
              %s354 = sphi %s345, %s345
            $region118: #{tpu_custom_call.1} parent=114 // loop_header_branch
              %351 = sbr.rel (%p349) target = $region122
            $region119: #{tpu_custom_call.1} parent=114 // loop_body
              %v355 = vld [vmem:[%s353] sm:%s346]
              %356 = vst [vmem:[%s354] sm:%s346] %v355
            $region120: #{tpu_custom_call.1} parent=114 // loop_footer
              %s352 = sadd.s32 1, %s348
            $region121: #{tpu_custom_call.1} parent=114 // loop_footer_branch
              %347 = sbr.rel target = $region117
            $region122: #{tpu_custom_call.1} parent=114 // loop_exit
              _
          $region115: #{tpu_custom_call.1} parent=99 // pred_fallthru
            _
        $region100: #{tpu_custom_call.1} parent=27 // pred_fallthru
          _
        // Predicated region
        $region101: #{tpu_custom_call.1} parent=27 // pred_check
          %p322 = pneg %p318
        $region102: #{tpu_custom_call.1} parent=27 // pred_check_branch
          %324 = sbr.rel (%p322) target = $region104
        $region103: #{tpu_custom_call.1} parent=27 // pred_region
          %s325 = sshllo.u32 0, 1
          loop: start=0, step=1, limit=1
          $region105: #{tpu_custom_call.1} parent=103 // loop_pre_header
            _
          $region106: #{tpu_custom_call.1} parent=103 // loop_header
            %s327 = sphi 0, %s331
            %p328 = scmp.ge.s32.totalorder %s327, 1
            %s332 = sphi %s314, %s314
            %s333 = sphi %s315, %s315
          $region107: #{tpu_custom_call.1} parent=103 // loop_header_branch
            %330 = sbr.rel (%p328) target = $region111
          $region108: #{tpu_custom_call.1} parent=103 // loop_body
            %v334 = vld [vmem:[%s332] sm:%s325]
            %335 = vst [vmem:[%s333] sm:%s325] %v334
          $region109: #{tpu_custom_call.1} parent=103 // loop_footer
            %s331 = sadd.s32 1, %s327
          $region110: #{tpu_custom_call.1} parent=103 // loop_footer_branch
            %326 = sbr.rel target = $region106
          $region111: #{tpu_custom_call.1} parent=103 // loop_exit
            _
        $region104: #{tpu_custom_call.1} parent=27 // pred_fallthru
          _
        // Predicated region
        $region123: #{tpu_custom_call.1} parent=27 // pred_check
          _
        $region124: #{tpu_custom_call.1} parent=27 // pred_check_branch
          %359 = sbr.rel (0) target = $region126
        $region125: #{tpu_custom_call.1} parent=27 // pred_region
          %360 = vsyncadd %s316, 16
        $region126: #{tpu_custom_call.1} parent=27 // pred_fallthru
          _
        %s361 = scalar_lea.vmem [#allocation12], %s205
        %s362 = scalar_lea.vmem [#allocation3], 1
        %s363 = scalar_lea.sflag [#allocation5], 1
        %p365 = scmp.lt.u32.totalorder 1, 8
        %p366 = pneg %p365
        // Predicated region
        $region127: #{tpu_custom_call.1} parent=27 // pred_check
          _
        $region128: #{tpu_custom_call.1} parent=27 // pred_check_branch
          %368 = sbr.rel (%p365) target = $region130
        $region129: #{tpu_custom_call.1} parent=27 // pred_region
          %s383 = sand.u32 1, 7
          %p384 = scmp.eq.s32.totalorder %s383, 0
          %p385 = pneg %p384
          // Predicated region
          $region142: #{tpu_custom_call.1} parent=129 // pred_check
            _
          $region143: #{tpu_custom_call.1} parent=129 // pred_check_branch
            %387 = sbr.rel (%p384) target = $region145
          $region144: #{tpu_custom_call.1} parent=129 // pred_region
            %s388 = sand.u32 1, 7
            %s389 = ssub.s32 1, %s388
            %s390 = scalar_lea.vmem %s361, %s389 [#allocation12]
            %s391 = ssub.s32 1, %s388
            %s392 = scalar_lea.vmem %s362, %s391 [#allocation3]
            %s393 = sshllo.u32 0, %s388
            loop: start=0, step=1, limit=1
            $region146: #{tpu_custom_call.1} parent=144 // loop_pre_header
              _
            $region147: #{tpu_custom_call.1} parent=144 // loop_header
              %s395 = sphi 0, %s399
              %p396 = scmp.ge.s32.totalorder %s395, 1
              %s400 = sphi %s390, %s390
              %s401 = sphi %s392, %s392
            $region148: #{tpu_custom_call.1} parent=144 // loop_header_branch
              %398 = sbr.rel (%p396) target = $region152
            $region149: #{tpu_custom_call.1} parent=144 // loop_body
              %v402 = vld [vmem:[%s400] sm:%s393]
              %403 = vst [vmem:[%s401] sm:%s393] %v402
            $region150: #{tpu_custom_call.1} parent=144 // loop_footer
              %s399 = sadd.s32 1, %s395
            $region151: #{tpu_custom_call.1} parent=144 // loop_footer_branch
              %394 = sbr.rel target = $region147
            $region152: #{tpu_custom_call.1} parent=144 // loop_exit
              _
          $region145: #{tpu_custom_call.1} parent=129 // pred_fallthru
            _
        $region130: #{tpu_custom_call.1} parent=27 // pred_fallthru
          _
        // Predicated region
        $region131: #{tpu_custom_call.1} parent=27 // pred_check
          %p369 = pneg %p365
        $region132: #{tpu_custom_call.1} parent=27 // pred_check_branch
          %371 = sbr.rel (%p369) target = $region134
        $region133: #{tpu_custom_call.1} parent=27 // pred_region
          %s372 = sshllo.u32 0, 1
          loop: start=0, step=1, limit=1
          $region135: #{tpu_custom_call.1} parent=133 // loop_pre_header
            _
          $region136: #{tpu_custom_call.1} parent=133 // loop_header
            %s374 = sphi 0, %s378
            %p375 = scmp.ge.s32.totalorder %s374, 1
            %s379 = sphi %s361, %s361
            %s380 = sphi %s362, %s362
          $region137: #{tpu_custom_call.1} parent=133 // loop_header_branch
            %377 = sbr.rel (%p375) target = $region141
          $region138: #{tpu_custom_call.1} parent=133 // loop_body
            %v381 = vld [vmem:[%s379] sm:%s372]
            %382 = vst [vmem:[%s380] sm:%s372] %v381
          $region139: #{tpu_custom_call.1} parent=133 // loop_footer
            %s378 = sadd.s32 1, %s374
          $region140: #{tpu_custom_call.1} parent=133 // loop_footer_branch
            %373 = sbr.rel target = $region136
          $region141: #{tpu_custom_call.1} parent=133 // loop_exit
            _
        $region134: #{tpu_custom_call.1} parent=27 // pred_fallthru
          _
        // Predicated region
        $region153: #{tpu_custom_call.1} parent=27 // pred_check
          _
        $region154: #{tpu_custom_call.1} parent=27 // pred_check_branch
          %406 = sbr.rel (0) target = $region156
        $region155: #{tpu_custom_call.1} parent=27 // pred_region
          %407 = vsyncadd %s363, 16
        $region156: #{tpu_custom_call.1} parent=27 // pred_fallthru
          _
        %s408 = scalar_lea.vmem [#allocation9], %s207
        %s409 = scalar_lea.vmem [#allocation2], 2
        %s410 = scalar_lea.sflag [#allocation4], 2
        %p412 = scmp.lt.u32.totalorder 1, 8
        %p413 = pneg %p412
        // Predicated region
        $region157: #{tpu_custom_call.1} parent=27 // pred_check
          _
        $region158: #{tpu_custom_call.1} parent=27 // pred_check_branch
          %415 = sbr.rel (%p412) target = $region160
        $region159: #{tpu_custom_call.1} parent=27 // pred_region
          %s430 = sand.u32 1, 7
          %p431 = scmp.eq.s32.totalorder %s430, 0
          %p432 = pneg %p431
          // Predicated region
          $region172: #{tpu_custom_call.1} parent=159 // pred_check
            _
          $region173: #{tpu_custom_call.1} parent=159 // pred_check_branch
            %434 = sbr.rel (%p431) target = $region175
          $region174: #{tpu_custom_call.1} parent=159 // pred_region
            %s435 = sand.u32 1, 7
            %s436 = ssub.s32 1, %s435
            %s437 = scalar_lea.vmem %s408, %s436 [#allocation9]
            %s438 = ssub.s32 1, %s435
            %s439 = scalar_lea.vmem %s409, %s438 [#allocation2]
            %s440 = sshllo.u32 0, %s435
            loop: start=0, step=1, limit=1
            $region176: #{tpu_custom_call.1} parent=174 // loop_pre_header
              _
            $region177: #{tpu_custom_call.1} parent=174 // loop_header
              %s442 = sphi 0, %s446
              %p443 = scmp.ge.s32.totalorder %s442, 1
              %s447 = sphi %s437, %s437
              %s448 = sphi %s439, %s439
            $region178: #{tpu_custom_call.1} parent=174 // loop_header_branch
              %445 = sbr.rel (%p443) target = $region182
            $region179: #{tpu_custom_call.1} parent=174 // loop_body
              %v449 = vld [vmem:[%s447] sm:%s440]
              %450 = vst [vmem:[%s448] sm:%s440] %v449
            $region180: #{tpu_custom_call.1} parent=174 // loop_footer
              %s446 = sadd.s32 1, %s442
            $region181: #{tpu_custom_call.1} parent=174 // loop_footer_branch
              %441 = sbr.rel target = $region177
            $region182: #{tpu_custom_call.1} parent=174 // loop_exit
              _
          $region175: #{tpu_custom_call.1} parent=159 // pred_fallthru
            _
        $region160: #{tpu_custom_call.1} parent=27 // pred_fallthru
          _
        // Predicated region
        $region161: #{tpu_custom_call.1} parent=27 // pred_check
          %p416 = pneg %p412
        $region162: #{tpu_custom_call.1} parent=27 // pred_check_branch
          %418 = sbr.rel (%p416) target = $region164
        $region163: #{tpu_custom_call.1} parent=27 // pred_region
          %s419 = sshllo.u32 0, 1
          loop: start=0, step=1, limit=1
          $region165: #{tpu_custom_call.1} parent=163 // loop_pre_header
            _
          $region166: #{tpu_custom_call.1} parent=163 // loop_header
            %s421 = sphi 0, %s425
            %p422 = scmp.ge.s32.totalorder %s421, 1
            %s426 = sphi %s408, %s408
            %s427 = sphi %s409, %s409
          $region167: #{tpu_custom_call.1} parent=163 // loop_header_branch
            %424 = sbr.rel (%p422) target = $region171
          $region168: #{tpu_custom_call.1} parent=163 // loop_body
            %v428 = vld [vmem:[%s426] sm:%s419]
            %429 = vst [vmem:[%s427] sm:%s419] %v428
          $region169: #{tpu_custom_call.1} parent=163 // loop_footer
            %s425 = sadd.s32 1, %s421
          $region170: #{tpu_custom_call.1} parent=163 // loop_footer_branch
            %420 = sbr.rel target = $region166
          $region171: #{tpu_custom_call.1} parent=163 // loop_exit
            _
        $region164: #{tpu_custom_call.1} parent=27 // pred_fallthru
          _
        // Predicated region
        $region183: #{tpu_custom_call.1} parent=27 // pred_check
          _
        $region184: #{tpu_custom_call.1} parent=27 // pred_check_branch
          %453 = sbr.rel (0) target = $region186
        $region185: #{tpu_custom_call.1} parent=27 // pred_region
          %454 = vsyncadd %s410, 16
        $region186: #{tpu_custom_call.1} parent=27 // pred_fallthru
          _
        %s455 = scalar_lea.vmem [#allocation12], %s208
        %s456 = scalar_lea.vmem [#allocation3], 2
        %s457 = scalar_lea.sflag [#allocation5], 2
        %p459 = scmp.lt.u32.totalorder 1, 8
        %p460 = pneg %p459
        // Predicated region
        $region187: #{tpu_custom_call.1} parent=27 // pred_check
          _
        $region188: #{tpu_custom_call.1} parent=27 // pred_check_branch
          %462 = sbr.rel (%p459) target = $region190
        $region189: #{tpu_custom_call.1} parent=27 // pred_region
          %s477 = sand.u32 1, 7
          %p478 = scmp.eq.s32.totalorder %s477, 0
          %p479 = pneg %p478
          // Predicated region
          $region202: #{tpu_custom_call.1} parent=189 // pred_check
            _
          $region203: #{tpu_custom_call.1} parent=189 // pred_check_branch
            %481 = sbr.rel (%p478) target = $region205
          $region204: #{tpu_custom_call.1} parent=189 // pred_region
            %s482 = sand.u32 1, 7
            %s483 = ssub.s32 1, %s482
            %s484 = scalar_lea.vmem %s455, %s483 [#allocation12]
            %s485 = ssub.s32 1, %s482
            %s486 = scalar_lea.vmem %s456, %s485 [#allocation3]
            %s487 = sshllo.u32 0, %s482
            loop: start=0, step=1, limit=1
            $region206: #{tpu_custom_call.1} parent=204 // loop_pre_header
              _
            $region207: #{tpu_custom_call.1} parent=204 // loop_header
              %s489 = sphi 0, %s493
              %p490 = scmp.ge.s32.totalorder %s489, 1
              %s494 = sphi %s484, %s484
              %s495 = sphi %s486, %s486
            $region208: #{tpu_custom_call.1} parent=204 // loop_header_branch
              %492 = sbr.rel (%p490) target = $region212
            $region209: #{tpu_custom_call.1} parent=204 // loop_body
              %v496 = vld [vmem:[%s494] sm:%s487]
              %497 = vst [vmem:[%s495] sm:%s487] %v496
            $region210: #{tpu_custom_call.1} parent=204 // loop_footer
              %s493 = sadd.s32 1, %s489
            $region211: #{tpu_custom_call.1} parent=204 // loop_footer_branch
              %488 = sbr.rel target = $region207
            $region212: #{tpu_custom_call.1} parent=204 // loop_exit
              _
          $region205: #{tpu_custom_call.1} parent=189 // pred_fallthru
            _
        $region190: #{tpu_custom_call.1} parent=27 // pred_fallthru
          _
        // Predicated region
        $region191: #{tpu_custom_call.1} parent=27 // pred_check
          %p463 = pneg %p459
        $region192: #{tpu_custom_call.1} parent=27 // pred_check_branch
          %465 = sbr.rel (%p463) target = $region194
        $region193: #{tpu_custom_call.1} parent=27 // pred_region
          %s466 = sshllo.u32 0, 1
          loop: start=0, step=1, limit=1
          $region195: #{tpu_custom_call.1} parent=193 // loop_pre_header
            _
          $region196: #{tpu_custom_call.1} parent=193 // loop_header
            %s468 = sphi 0, %s472
            %p469 = scmp.ge.s32.totalorder %s468, 1
            %s473 = sphi %s455, %s455
            %s474 = sphi %s456, %s456
          $region197: #{tpu_custom_call.1} parent=193 // loop_header_branch
            %471 = sbr.rel (%p469) target = $region201
          $region198: #{tpu_custom_call.1} parent=193 // loop_body
            %v475 = vld [vmem:[%s473] sm:%s466]
            %476 = vst [vmem:[%s474] sm:%s466] %v475
          $region199: #{tpu_custom_call.1} parent=193 // loop_footer
            %s472 = sadd.s32 1, %s468
          $region200: #{tpu_custom_call.1} parent=193 // loop_footer_branch
            %467 = sbr.rel target = $region196
          $region201: #{tpu_custom_call.1} parent=193 // loop_exit
            _
        $region194: #{tpu_custom_call.1} parent=27 // pred_fallthru
          _
        // Predicated region
        $region213: #{tpu_custom_call.1} parent=27 // pred_check
          _
        $region214: #{tpu_custom_call.1} parent=27 // pred_check_branch
          %500 = sbr.rel (0) target = $region216
        $region215: #{tpu_custom_call.1} parent=27 // pred_region
          %501 = vsyncadd %s457, 16
        $region216: #{tpu_custom_call.1} parent=27 // pred_fallthru
          _
        %s502 = scalar_lea.vmem [#allocation9], %s210
        %s503 = scalar_lea.vmem [#allocation2], 3
        %s504 = scalar_lea.sflag [#allocation4], 3
        %p506 = scmp.lt.u32.totalorder 1, 8
        %p507 = pneg %p506
        // Predicated region
        $region217: #{tpu_custom_call.1} parent=27 // pred_check
          _
        $region218: #{tpu_custom_call.1} parent=27 // pred_check_branch
          %509 = sbr.rel (%p506) target = $region220
        $region219: #{tpu_custom_call.1} parent=27 // pred_region
          %s524 = sand.u32 1, 7
          %p525 = scmp.eq.s32.totalorder %s524, 0
          %p526 = pneg %p525
          // Predicated region
          $region232: #{tpu_custom_call.1} parent=219 // pred_check
            _
          $region233: #{tpu_custom_call.1} parent=219 // pred_check_branch
            %528 = sbr.rel (%p525) target = $region235
          $region234: #{tpu_custom_call.1} parent=219 // pred_region
            %s529 = sand.u32 1, 7
            %s530 = ssub.s32 1, %s529
            %s531 = scalar_lea.vmem %s502, %s530 [#allocation9]
            %s532 = ssub.s32 1, %s529
            %s533 = scalar_lea.vmem %s503, %s532 [#allocation2]
            %s534 = sshllo.u32 0, %s529
            loop: start=0, step=1, limit=1
            $region236: #{tpu_custom_call.1} parent=234 // loop_pre_header
              _
            $region237: #{tpu_custom_call.1} parent=234 // loop_header
              %s536 = sphi 0, %s540
              %p537 = scmp.ge.s32.totalorder %s536, 1
              %s541 = sphi %s531, %s531
              %s542 = sphi %s533, %s533
            $region238: #{tpu_custom_call.1} parent=234 // loop_header_branch
              %539 = sbr.rel (%p537) target = $region242
            $region239: #{tpu_custom_call.1} parent=234 // loop_body
              %v543 = vld [vmem:[%s541] sm:%s534]
              %544 = vst [vmem:[%s542] sm:%s534] %v543
            $region240: #{tpu_custom_call.1} parent=234 // loop_footer
              %s540 = sadd.s32 1, %s536
            $region241: #{tpu_custom_call.1} parent=234 // loop_footer_branch
              %535 = sbr.rel target = $region237
            $region242: #{tpu_custom_call.1} parent=234 // loop_exit
              _
          $region235: #{tpu_custom_call.1} parent=219 // pred_fallthru
            _
        $region220: #{tpu_custom_call.1} parent=27 // pred_fallthru
          _
        // Predicated region
        $region221: #{tpu_custom_call.1} parent=27 // pred_check
          %p510 = pneg %p506
        $region222: #{tpu_custom_call.1} parent=27 // pred_check_branch
          %512 = sbr.rel (%p510) target = $region224
        $region223: #{tpu_custom_call.1} parent=27 // pred_region
          %s513 = sshllo.u32 0, 1
          loop: start=0, step=1, limit=1
          $region225: #{tpu_custom_call.1} parent=223 // loop_pre_header
            _
          $region226: #{tpu_custom_call.1} parent=223 // loop_header
            %s515 = sphi 0, %s519
            %p516 = scmp.ge.s32.totalorder %s515, 1
            %s520 = sphi %s502, %s502
            %s521 = sphi %s503, %s503
          $region227: #{tpu_custom_call.1} parent=223 // loop_header_branch
            %518 = sbr.rel (%p516) target = $region231
          $region228: #{tpu_custom_call.1} parent=223 // loop_body
            %v522 = vld [vmem:[%s520] sm:%s513]
            %523 = vst [vmem:[%s521] sm:%s513] %v522
          $region229: #{tpu_custom_call.1} parent=223 // loop_footer
            %s519 = sadd.s32 1, %s515
          $region230: #{tpu_custom_call.1} parent=223 // loop_footer_branch
            %514 = sbr.rel target = $region226
          $region231: #{tpu_custom_call.1} parent=223 // loop_exit
            _
        $region224: #{tpu_custom_call.1} parent=27 // pred_fallthru
          _
        // Predicated region
        $region243: #{tpu_custom_call.1} parent=27 // pred_check
          _
        $region244: #{tpu_custom_call.1} parent=27 // pred_check_branch
          %547 = sbr.rel (0) target = $region246
        $region245: #{tpu_custom_call.1} parent=27 // pred_region
          %548 = vsyncadd %s504, 16
        $region246: #{tpu_custom_call.1} parent=27 // pred_fallthru
          _
        %s549 = scalar_lea.vmem [#allocation12], %s211
        %s550 = scalar_lea.vmem [#allocation3], 3
        %s551 = scalar_lea.sflag [#allocation5], 3
        %p553 = scmp.lt.u32.totalorder 1, 8
        %p554 = pneg %p553
        // Predicated region
        $region247: #{tpu_custom_call.1} parent=27 // pred_check
          _
        $region248: #{tpu_custom_call.1} parent=27 // pred_check_branch
          %556 = sbr.rel (%p553) target = $region250
        $region249: #{tpu_custom_call.1} parent=27 // pred_region
          %s571 = sand.u32 1, 7
          %p572 = scmp.eq.s32.totalorder %s571, 0
          %p573 = pneg %p572
          // Predicated region
          $region262: #{tpu_custom_call.1} parent=249 // pred_check
            _
          $region263: #{tpu_custom_call.1} parent=249 // pred_check_branch
            %575 = sbr.rel (%p572) target = $region265
          $region264: #{tpu_custom_call.1} parent=249 // pred_region
            %s576 = sand.u32 1, 7
            %s577 = ssub.s32 1, %s576
            %s578 = scalar_lea.vmem %s549, %s577 [#allocation12]
            %s579 = ssub.s32 1, %s576
            %s580 = scalar_lea.vmem %s550, %s579 [#allocation3]
            %s581 = sshllo.u32 0, %s576
            loop: start=0, step=1, limit=1
            $region266: #{tpu_custom_call.1} parent=264 // loop_pre_header
              _
            $region267: #{tpu_custom_call.1} parent=264 // loop_header
              %s583 = sphi 0, %s587
              %p584 = scmp.ge.s32.totalorder %s583, 1
              %s588 = sphi %s578, %s578
              %s589 = sphi %s580, %s580
            $region268: #{tpu_custom_call.1} parent=264 // loop_header_branch
              %586 = sbr.rel (%p584) target = $region272
            $region269: #{tpu_custom_call.1} parent=264 // loop_body
              %v590 = vld [vmem:[%s588] sm:%s581]
              %591 = vst [vmem:[%s589] sm:%s581] %v590
            $region270: #{tpu_custom_call.1} parent=264 // loop_footer
              %s587 = sadd.s32 1, %s583
            $region271: #{tpu_custom_call.1} parent=264 // loop_footer_branch
              %582 = sbr.rel target = $region267
            $region272: #{tpu_custom_call.1} parent=264 // loop_exit
              _
          $region265: #{tpu_custom_call.1} parent=249 // pred_fallthru
            _
        $region250: #{tpu_custom_call.1} parent=27 // pred_fallthru
          _
        // Predicated region
        $region251: #{tpu_custom_call.1} parent=27 // pred_check
          %p557 = pneg %p553
        $region252: #{tpu_custom_call.1} parent=27 // pred_check_branch
          %559 = sbr.rel (%p557) target = $region254
        $region253: #{tpu_custom_call.1} parent=27 // pred_region
          %s560 = sshllo.u32 0, 1
          loop: start=0, step=1, limit=1
          $region255: #{tpu_custom_call.1} parent=253 // loop_pre_header
            _
          $region256: #{tpu_custom_call.1} parent=253 // loop_header
            %s562 = sphi 0, %s566
            %p563 = scmp.ge.s32.totalorder %s562, 1
            %s567 = sphi %s549, %s549
            %s568 = sphi %s550, %s550
          $region257: #{tpu_custom_call.1} parent=253 // loop_header_branch
            %565 = sbr.rel (%p563) target = $region261
          $region258: #{tpu_custom_call.1} parent=253 // loop_body
            %v569 = vld [vmem:[%s567] sm:%s560]
            %570 = vst [vmem:[%s568] sm:%s560] %v569
          $region259: #{tpu_custom_call.1} parent=253 // loop_footer
            %s566 = sadd.s32 1, %s562
          $region260: #{tpu_custom_call.1} parent=253 // loop_footer_branch
            %561 = sbr.rel target = $region256
          $region261: #{tpu_custom_call.1} parent=253 // loop_exit
            _
        $region254: #{tpu_custom_call.1} parent=27 // pred_fallthru
          _
        // Predicated region
        $region273: #{tpu_custom_call.1} parent=27 // pred_check
          _
        $region274: #{tpu_custom_call.1} parent=27 // pred_check_branch
          %594 = sbr.rel (0) target = $region276
        $region275: #{tpu_custom_call.1} parent=27 // pred_region
          %595 = vsyncadd %s551, 16
        $region276: #{tpu_custom_call.1} parent=27 // pred_fallthru
          _
        %s596 = scalar_lea.vmem [#allocation9], %s213
        %s597 = scalar_lea.vmem [#allocation2], 4
        %s598 = scalar_lea.sflag [#allocation4], 4
        %p600 = scmp.lt.u32.totalorder 1, 8
        %p601 = pneg %p600
        // Predicated region
        $region277: #{tpu_custom_call.1} parent=27 // pred_check
          _
        $region278: #{tpu_custom_call.1} parent=27 // pred_check_branch
          %603 = sbr.rel (%p600) target = $region280
        $region279: #{tpu_custom_call.1} parent=27 // pred_region
          %s618 = sand.u32 1, 7
          %p619 = scmp.eq.s32.totalorder %s618, 0
          %p620 = pneg %p619
          // Predicated region
          $region292: #{tpu_custom_call.1} parent=279 // pred_check
            _
          $region293: #{tpu_custom_call.1} parent=279 // pred_check_branch
            %622 = sbr.rel (%p619) target = $region295
          $region294: #{tpu_custom_call.1} parent=279 // pred_region
            %s623 = sand.u32 1, 7
            %s624 = ssub.s32 1, %s623
            %s625 = scalar_lea.vmem %s596, %s624 [#allocation9]
            %s626 = ssub.s32 1, %s623
            %s627 = scalar_lea.vmem %s597, %s626 [#allocation2]
            %s628 = sshllo.u32 0, %s623
            loop: start=0, step=1, limit=1
            $region296: #{tpu_custom_call.1} parent=294 // loop_pre_header
              _
            $region297: #{tpu_custom_call.1} parent=294 // loop_header
              %s630 = sphi 0, %s634
              %p631 = scmp.ge.s32.totalorder %s630, 1
              %s635 = sphi %s625, %s625
              %s636 = sphi %s627, %s627
            $region298: #{tpu_custom_call.1} parent=294 // loop_header_branch
              %633 = sbr.rel (%p631) target = $region302
            $region299: #{tpu_custom_call.1} parent=294 // loop_body
              %v637 = vld [vmem:[%s635] sm:%s628]
              %638 = vst [vmem:[%s636] sm:%s628] %v637
            $region300: #{tpu_custom_call.1} parent=294 // loop_footer
              %s634 = sadd.s32 1, %s630
            $region301: #{tpu_custom_call.1} parent=294 // loop_footer_branch
              %629 = sbr.rel target = $region297
            $region302: #{tpu_custom_call.1} parent=294 // loop_exit
              _
          $region295: #{tpu_custom_call.1} parent=279 // pred_fallthru
            _
        $region280: #{tpu_custom_call.1} parent=27 // pred_fallthru
          _
        // Predicated region
        $region281: #{tpu_custom_call.1} parent=27 // pred_check
          %p604 = pneg %p600
        $region282: #{tpu_custom_call.1} parent=27 // pred_check_branch
          %606 = sbr.rel (%p604) target = $region284
        $region283: #{tpu_custom_call.1} parent=27 // pred_region
          %s607 = sshllo.u32 0, 1
          loop: start=0, step=1, limit=1
          $region285: #{tpu_custom_call.1} parent=283 // loop_pre_header
            _
          $region286: #{tpu_custom_call.1} parent=283 // loop_header
            %s609 = sphi 0, %s613
            %p610 = scmp.ge.s32.totalorder %s609, 1
            %s614 = sphi %s596, %s596
            %s615 = sphi %s597, %s597
          $region287: #{tpu_custom_call.1} parent=283 // loop_header_branch
            %612 = sbr.rel (%p610) target = $region291
          $region288: #{tpu_custom_call.1} parent=283 // loop_body
            %v616 = vld [vmem:[%s614] sm:%s607]
            %617 = vst [vmem:[%s615] sm:%s607] %v616
          $region289: #{tpu_custom_call.1} parent=283 // loop_footer
            %s613 = sadd.s32 1, %s609
          $region290: #{tpu_custom_call.1} parent=283 // loop_footer_branch
            %608 = sbr.rel target = $region286
          $region291: #{tpu_custom_call.1} parent=283 // loop_exit
            _
        $region284: #{tpu_custom_call.1} parent=27 // pred_fallthru
          _
        // Predicated region
        $region303: #{tpu_custom_call.1} parent=27 // pred_check
          _
        $region304: #{tpu_custom_call.1} parent=27 // pred_check_branch
          %641 = sbr.rel (0) target = $region306
        $region305: #{tpu_custom_call.1} parent=27 // pred_region
          %642 = vsyncadd %s598, 16
        $region306: #{tpu_custom_call.1} parent=27 // pred_fallthru
          _
        %s643 = scalar_lea.vmem [#allocation12], %s214
        %s644 = scalar_lea.vmem [#allocation3], 4
        %s645 = scalar_lea.sflag [#allocation5], 4
        %p647 = scmp.lt.u32.totalorder 1, 8
        %p648 = pneg %p647
        // Predicated region
        $region307: #{tpu_custom_call.1} parent=27 // pred_check
          _
        $region308: #{tpu_custom_call.1} parent=27 // pred_check_branch
          %650 = sbr.rel (%p647) target = $region310
        $region309: #{tpu_custom_call.1} parent=27 // pred_region
          %s665 = sand.u32 1, 7
          %p666 = scmp.eq.s32.totalorder %s665, 0
          %p667 = pneg %p666
          // Predicated region
          $region322: #{tpu_custom_call.1} parent=309 // pred_check
            _
          $region323: #{tpu_custom_call.1} parent=309 // pred_check_branch
            %669 = sbr.rel (%p666) target = $region325
          $region324: #{tpu_custom_call.1} parent=309 // pred_region
            %s670 = sand.u32 1, 7
            %s671 = ssub.s32 1, %s670
            %s672 = scalar_lea.vmem %s643, %s671 [#allocation12]
            %s673 = ssub.s32 1, %s670
            %s674 = scalar_lea.vmem %s644, %s673 [#allocation3]
            %s675 = sshllo.u32 0, %s670
            loop: start=0, step=1, limit=1
            $region326: #{tpu_custom_call.1} parent=324 // loop_pre_header
              _
            $region327: #{tpu_custom_call.1} parent=324 // loop_header
              %s677 = sphi 0, %s681
              %p678 = scmp.ge.s32.totalorder %s677, 1
              %s682 = sphi %s672, %s672
              %s683 = sphi %s674, %s674
            $region328: #{tpu_custom_call.1} parent=324 // loop_header_branch
              %680 = sbr.rel (%p678) target = $region332
            $region329: #{tpu_custom_call.1} parent=324 // loop_body
              %v684 = vld [vmem:[%s682] sm:%s675]
              %685 = vst [vmem:[%s683] sm:%s675] %v684
            $region330: #{tpu_custom_call.1} parent=324 // loop_footer
              %s681 = sadd.s32 1, %s677
            $region331: #{tpu_custom_call.1} parent=324 // loop_footer_branch
              %676 = sbr.rel target = $region327
            $region332: #{tpu_custom_call.1} parent=324 // loop_exit
              _
          $region325: #{tpu_custom_call.1} parent=309 // pred_fallthru
            _
        $region310: #{tpu_custom_call.1} parent=27 // pred_fallthru
          _
        // Predicated region
        $region311: #{tpu_custom_call.1} parent=27 // pred_check
          %p651 = pneg %p647
        $region312: #{tpu_custom_call.1} parent=27 // pred_check_branch
          %653 = sbr.rel (%p651) target = $region314
        $region313: #{tpu_custom_call.1} parent=27 // pred_region
          %s654 = sshllo.u32 0, 1
          loop: start=0, step=1, limit=1
          $region315: #{tpu_custom_call.1} parent=313 // loop_pre_header
            _
          $region316: #{tpu_custom_call.1} parent=313 // loop_header
            %s656 = sphi 0, %s660
            %p657 = scmp.ge.s32.totalorder %s656, 1
            %s661 = sphi %s643, %s643
            %s662 = sphi %s644, %s644
          $region317: #{tpu_custom_call.1} parent=313 // loop_header_branch
            %659 = sbr.rel (%p657) target = $region321
          $region318: #{tpu_custom_call.1} parent=313 // loop_body
            %v663 = vld [vmem:[%s661] sm:%s654]
            %664 = vst [vmem:[%s662] sm:%s654] %v663
          $region319: #{tpu_custom_call.1} parent=313 // loop_footer
            %s660 = sadd.s32 1, %s656
          $region320: #{tpu_custom_call.1} parent=313 // loop_footer_branch
            %655 = sbr.rel target = $region316
          $region321: #{tpu_custom_call.1} parent=313 // loop_exit
            _
        $region314: #{tpu_custom_call.1} parent=27 // pred_fallthru
          _
        // Predicated region
        $region333: #{tpu_custom_call.1} parent=27 // pred_check
          _
        $region334: #{tpu_custom_call.1} parent=27 // pred_check_branch
          %688 = sbr.rel (0) target = $region336
        $region335: #{tpu_custom_call.1} parent=27 // pred_region
          %689 = vsyncadd %s645, 16
        $region336: #{tpu_custom_call.1} parent=27 // pred_fallthru
          _
        %s690 = scalar_lea.vmem [#allocation9], %s216
        %s691 = scalar_lea.vmem [#allocation2], 5
        %s692 = scalar_lea.sflag [#allocation4], 5
        %p694 = scmp.lt.u32.totalorder 1, 8
        %p695 = pneg %p694
        // Predicated region
        $region337: #{tpu_custom_call.1} parent=27 // pred_check
          _
        $region338: #{tpu_custom_call.1} parent=27 // pred_check_branch
          %697 = sbr.rel (%p694) target = $region340
        $region339: #{tpu_custom_call.1} parent=27 // pred_region
          %s712 = sand.u32 1, 7
          %p713 = scmp.eq.s32.totalorder %s712, 0
          %p714 = pneg %p713
          // Predicated region
          $region352: #{tpu_custom_call.1} parent=339 // pred_check
            _
          $region353: #{tpu_custom_call.1} parent=339 // pred_check_branch
            %716 = sbr.rel (%p713) target = $region355
          $region354: #{tpu_custom_call.1} parent=339 // pred_region
            %s717 = sand.u32 1, 7
            %s718 = ssub.s32 1, %s717
            %s719 = scalar_lea.vmem %s690, %s718 [#allocation9]
            %s720 = ssub.s32 1, %s717
            %s721 = scalar_lea.vmem %s691, %s720 [#allocation2]
            %s722 = sshllo.u32 0, %s717
            loop: start=0, step=1, limit=1
            $region356: #{tpu_custom_call.1} parent=354 // loop_pre_header
              _
            $region357: #{tpu_custom_call.1} parent=354 // loop_header
              %s724 = sphi 0, %s728
              %p725 = scmp.ge.s32.totalorder %s724, 1
              %s729 = sphi %s719, %s719
              %s730 = sphi %s721, %s721
            $region358: #{tpu_custom_call.1} parent=354 // loop_header_branch
              %727 = sbr.rel (%p725) target = $region362
            $region359: #{tpu_custom_call.1} parent=354 // loop_body
              %v731 = vld [vmem:[%s729] sm:%s722]
              %732 = vst [vmem:[%s730] sm:%s722] %v731
            $region360: #{tpu_custom_call.1} parent=354 // loop_footer
              %s728 = sadd.s32 1, %s724
            $region361: #{tpu_custom_call.1} parent=354 // loop_footer_branch
              %723 = sbr.rel target = $region357
            $region362: #{tpu_custom_call.1} parent=354 // loop_exit
              _
          $region355: #{tpu_custom_call.1} parent=339 // pred_fallthru
            _
        $region340: #{tpu_custom_call.1} parent=27 // pred_fallthru
          _
        // Predicated region
        $region341: #{tpu_custom_call.1} parent=27 // pred_check
          %p698 = pneg %p694
        $region342: #{tpu_custom_call.1} parent=27 // pred_check_branch
          %700 = sbr.rel (%p698) target = $region344
        $region343: #{tpu_custom_call.1} parent=27 // pred_region
          %s701 = sshllo.u32 0, 1
          loop: start=0, step=1, limit=1
          $region345: #{tpu_custom_call.1} parent=343 // loop_pre_header
            _
          $region346: #{tpu_custom_call.1} parent=343 // loop_header
            %s703 = sphi 0, %s707
            %p704 = scmp.ge.s32.totalorder %s703, 1
            %s708 = sphi %s690, %s690
            %s709 = sphi %s691, %s691
          $region347: #{tpu_custom_call.1} parent=343 // loop_header_branch
            %706 = sbr.rel (%p704) target = $region351
          $region348: #{tpu_custom_call.1} parent=343 // loop_body
            %v710 = vld [vmem:[%s708] sm:%s701]
            %711 = vst [vmem:[%s709] sm:%s701] %v710
          $region349: #{tpu_custom_call.1} parent=343 // loop_footer
            %s707 = sadd.s32 1, %s703
          $region350: #{tpu_custom_call.1} parent=343 // loop_footer_branch
            %702 = sbr.rel target = $region346
          $region351: #{tpu_custom_call.1} parent=343 // loop_exit
            _
        $region344: #{tpu_custom_call.1} parent=27 // pred_fallthru
          _
        // Predicated region
        $region363: #{tpu_custom_call.1} parent=27 // pred_check
          _
        $region364: #{tpu_custom_call.1} parent=27 // pred_check_branch
          %735 = sbr.rel (0) target = $region366
        $region365: #{tpu_custom_call.1} parent=27 // pred_region
          %736 = vsyncadd %s692, 16
        $region366: #{tpu_custom_call.1} parent=27 // pred_fallthru
          _
        %s737 = scalar_lea.vmem [#allocation12], %s217
        %s738 = scalar_lea.vmem [#allocation3], 5
        %s739 = scalar_lea.sflag [#allocation5], 5
        %p741 = scmp.lt.u32.totalorder 1, 8
        %p742 = pneg %p741
        // Predicated region
        $region367: #{tpu_custom_call.1} parent=27 // pred_check
          _
        $region368: #{tpu_custom_call.1} parent=27 // pred_check_branch
          %744 = sbr.rel (%p741) target = $region370
        $region369: #{tpu_custom_call.1} parent=27 // pred_region
          %s759 = sand.u32 1, 7
          %p760 = scmp.eq.s32.totalorder %s759, 0
          %p761 = pneg %p760
          // Predicated region
          $region382: #{tpu_custom_call.1} parent=369 // pred_check
            _
          $region383: #{tpu_custom_call.1} parent=369 // pred_check_branch
            %763 = sbr.rel (%p760) target = $region385
          $region384: #{tpu_custom_call.1} parent=369 // pred_region
            %s764 = sand.u32 1, 7
            %s765 = ssub.s32 1, %s764
            %s766 = scalar_lea.vmem %s737, %s765 [#allocation12]
            %s767 = ssub.s32 1, %s764
            %s768 = scalar_lea.vmem %s738, %s767 [#allocation3]
            %s769 = sshllo.u32 0, %s764
            loop: start=0, step=1, limit=1
            $region386: #{tpu_custom_call.1} parent=384 // loop_pre_header
              _
            $region387: #{tpu_custom_call.1} parent=384 // loop_header
              %s771 = sphi 0, %s775
              %p772 = scmp.ge.s32.totalorder %s771, 1
              %s776 = sphi %s766, %s766
              %s777 = sphi %s768, %s768
            $region388: #{tpu_custom_call.1} parent=384 // loop_header_branch
              %774 = sbr.rel (%p772) target = $region392
            $region389: #{tpu_custom_call.1} parent=384 // loop_body
              %v778 = vld [vmem:[%s776] sm:%s769]
              %779 = vst [vmem:[%s777] sm:%s769] %v778
            $region390: #{tpu_custom_call.1} parent=384 // loop_footer
              %s775 = sadd.s32 1, %s771
            $region391: #{tpu_custom_call.1} parent=384 // loop_footer_branch
              %770 = sbr.rel target = $region387
            $region392: #{tpu_custom_call.1} parent=384 // loop_exit
              _
          $region385: #{tpu_custom_call.1} parent=369 // pred_fallthru
            _
        $region370: #{tpu_custom_call.1} parent=27 // pred_fallthru
          _
        // Predicated region
        $region371: #{tpu_custom_call.1} parent=27 // pred_check
          %p745 = pneg %p741
        $region372: #{tpu_custom_call.1} parent=27 // pred_check_branch
          %747 = sbr.rel (%p745) target = $region374
        $region373: #{tpu_custom_call.1} parent=27 // pred_region
          %s748 = sshllo.u32 0, 1
          loop: start=0, step=1, limit=1
          $region375: #{tpu_custom_call.1} parent=373 // loop_pre_header
            _
          $region376: #{tpu_custom_call.1} parent=373 // loop_header
            %s750 = sphi 0, %s754
            %p751 = scmp.ge.s32.totalorder %s750, 1
            %s755 = sphi %s737, %s737
            %s756 = sphi %s738, %s738
          $region377: #{tpu_custom_call.1} parent=373 // loop_header_branch
            %753 = sbr.rel (%p751) target = $region381
          $region378: #{tpu_custom_call.1} parent=373 // loop_body
            %v757 = vld [vmem:[%s755] sm:%s748]
            %758 = vst [vmem:[%s756] sm:%s748] %v757
          $region379: #{tpu_custom_call.1} parent=373 // loop_footer
            %s754 = sadd.s32 1, %s750
          $region380: #{tpu_custom_call.1} parent=373 // loop_footer_branch
            %749 = sbr.rel target = $region376
          $region381: #{tpu_custom_call.1} parent=373 // loop_exit
            _
        $region374: #{tpu_custom_call.1} parent=27 // pred_fallthru
          _
        // Predicated region
        $region393: #{tpu_custom_call.1} parent=27 // pred_check
          _
        $region394: #{tpu_custom_call.1} parent=27 // pred_check_branch
          %782 = sbr.rel (0) target = $region396
        $region395: #{tpu_custom_call.1} parent=27 // pred_region
          %783 = vsyncadd %s739, 16
        $region396: #{tpu_custom_call.1} parent=27 // pred_fallthru
          _
        %s784 = scalar_lea.vmem [#allocation9], %s219
        %s785 = scalar_lea.vmem [#allocation2], 6
        %s786 = scalar_lea.sflag [#allocation4], 6
        %p788 = scmp.lt.u32.totalorder 1, 8
        %p789 = pneg %p788
        // Predicated region
        $region397: #{tpu_custom_call.1} parent=27 // pred_check
          _
        $region398: #{tpu_custom_call.1} parent=27 // pred_check_branch
          %791 = sbr.rel (%p788) target = $region400
        $region399: #{tpu_custom_call.1} parent=27 // pred_region
          %s806 = sand.u32 1, 7
          %p807 = scmp.eq.s32.totalorder %s806, 0
          %p808 = pneg %p807
          // Predicated region
          $region412: #{tpu_custom_call.1} parent=399 // pred_check
            _
          $region413: #{tpu_custom_call.1} parent=399 // pred_check_branch
            %810 = sbr.rel (%p807) target = $region415
          $region414: #{tpu_custom_call.1} parent=399 // pred_region
            %s811 = sand.u32 1, 7
            %s812 = ssub.s32 1, %s811
            %s813 = scalar_lea.vmem %s784, %s812 [#allocation9]
            %s814 = ssub.s32 1, %s811
            %s815 = scalar_lea.vmem %s785, %s814 [#allocation2]
            %s816 = sshllo.u32 0, %s811
            loop: start=0, step=1, limit=1
            $region416: #{tpu_custom_call.1} parent=414 // loop_pre_header
              _
            $region417: #{tpu_custom_call.1} parent=414 // loop_header
              %s818 = sphi 0, %s822
              %p819 = scmp.ge.s32.totalorder %s818, 1
              %s823 = sphi %s813, %s813
              %s824 = sphi %s815, %s815
            $region418: #{tpu_custom_call.1} parent=414 // loop_header_branch
              %821 = sbr.rel (%p819) target = $region422
            $region419: #{tpu_custom_call.1} parent=414 // loop_body
              %v825 = vld [vmem:[%s823] sm:%s816]
              %826 = vst [vmem:[%s824] sm:%s816] %v825
            $region420: #{tpu_custom_call.1} parent=414 // loop_footer
              %s822 = sadd.s32 1, %s818
            $region421: #{tpu_custom_call.1} parent=414 // loop_footer_branch
              %817 = sbr.rel target = $region417
            $region422: #{tpu_custom_call.1} parent=414 // loop_exit
              _
          $region415: #{tpu_custom_call.1} parent=399 // pred_fallthru
            _
        $region400: #{tpu_custom_call.1} parent=27 // pred_fallthru
          _
        // Predicated region
        $region401: #{tpu_custom_call.1} parent=27 // pred_check
          %p792 = pneg %p788
        $region402: #{tpu_custom_call.1} parent=27 // pred_check_branch
          %794 = sbr.rel (%p792) target = $region404
        $region403: #{tpu_custom_call.1} parent=27 // pred_region
          %s795 = sshllo.u32 0, 1
          loop: start=0, step=1, limit=1
          $region405: #{tpu_custom_call.1} parent=403 // loop_pre_header
            _
          $region406: #{tpu_custom_call.1} parent=403 // loop_header
            %s797 = sphi 0, %s801
            %p798 = scmp.ge.s32.totalorder %s797, 1
            %s802 = sphi %s784, %s784
            %s803 = sphi %s785, %s785
          $region407: #{tpu_custom_call.1} parent=403 // loop_header_branch
            %800 = sbr.rel (%p798) target = $region411
          $region408: #{tpu_custom_call.1} parent=403 // loop_body
            %v804 = vld [vmem:[%s802] sm:%s795]
            %805 = vst [vmem:[%s803] sm:%s795] %v804
          $region409: #{tpu_custom_call.1} parent=403 // loop_footer
            %s801 = sadd.s32 1, %s797
          $region410: #{tpu_custom_call.1} parent=403 // loop_footer_branch
            %796 = sbr.rel target = $region406
          $region411: #{tpu_custom_call.1} parent=403 // loop_exit
            _
        $region404: #{tpu_custom_call.1} parent=27 // pred_fallthru
          _
        // Predicated region
        $region423: #{tpu_custom_call.1} parent=27 // pred_check
          _
        $region424: #{tpu_custom_call.1} parent=27 // pred_check_branch
          %829 = sbr.rel (0) target = $region426
        $region425: #{tpu_custom_call.1} parent=27 // pred_region
          %830 = vsyncadd %s786, 16
        $region426: #{tpu_custom_call.1} parent=27 // pred_fallthru
          _
        %s831 = scalar_lea.vmem [#allocation12], %s220
        %s832 = scalar_lea.vmem [#allocation3], 6
        %s833 = scalar_lea.sflag [#allocation5], 6
        %p835 = scmp.lt.u32.totalorder 1, 8
        %p836 = pneg %p835
        // Predicated region
        $region427: #{tpu_custom_call.1} parent=27 // pred_check
          _
        $region428: #{tpu_custom_call.1} parent=27 // pred_check_branch
          %838 = sbr.rel (%p835) target = $region430
        $region429: #{tpu_custom_call.1} parent=27 // pred_region
          %s853 = sand.u32 1, 7
          %p854 = scmp.eq.s32.totalorder %s853, 0
          %p855 = pneg %p854
          // Predicated region
          $region442: #{tpu_custom_call.1} parent=429 // pred_check
            _
          $region443: #{tpu_custom_call.1} parent=429 // pred_check_branch
            %857 = sbr.rel (%p854) target = $region445
          $region444: #{tpu_custom_call.1} parent=429 // pred_region
            %s858 = sand.u32 1, 7
            %s859 = ssub.s32 1, %s858
            %s860 = scalar_lea.vmem %s831, %s859 [#allocation12]
            %s861 = ssub.s32 1, %s858
            %s862 = scalar_lea.vmem %s832, %s861 [#allocation3]
            %s863 = sshllo.u32 0, %s858
            loop: start=0, step=1, limit=1
            $region446: #{tpu_custom_call.1} parent=444 // loop_pre_header
              _
            $region447: #{tpu_custom_call.1} parent=444 // loop_header
              %s865 = sphi 0, %s869
              %p866 = scmp.ge.s32.totalorder %s865, 1
              %s870 = sphi %s860, %s860
              %s871 = sphi %s862, %s862
            $region448: #{tpu_custom_call.1} parent=444 // loop_header_branch
              %868 = sbr.rel (%p866) target = $region452
            $region449: #{tpu_custom_call.1} parent=444 // loop_body
              %v872 = vld [vmem:[%s870] sm:%s863]
              %873 = vst [vmem:[%s871] sm:%s863] %v872
            $region450: #{tpu_custom_call.1} parent=444 // loop_footer
              %s869 = sadd.s32 1, %s865
            $region451: #{tpu_custom_call.1} parent=444 // loop_footer_branch
              %864 = sbr.rel target = $region447
            $region452: #{tpu_custom_call.1} parent=444 // loop_exit
              _
          $region445: #{tpu_custom_call.1} parent=429 // pred_fallthru
            _
        $region430: #{tpu_custom_call.1} parent=27 // pred_fallthru
          _
        // Predicated region
        $region431: #{tpu_custom_call.1} parent=27 // pred_check
          %p839 = pneg %p835
        $region432: #{tpu_custom_call.1} parent=27 // pred_check_branch
          %841 = sbr.rel (%p839) target = $region434
        $region433: #{tpu_custom_call.1} parent=27 // pred_region
          %s842 = sshllo.u32 0, 1
          loop: start=0, step=1, limit=1
          $region435: #{tpu_custom_call.1} parent=433 // loop_pre_header
            _
          $region436: #{tpu_custom_call.1} parent=433 // loop_header
            %s844 = sphi 0, %s848
            %p845 = scmp.ge.s32.totalorder %s844, 1
            %s849 = sphi %s831, %s831
            %s850 = sphi %s832, %s832
          $region437: #{tpu_custom_call.1} parent=433 // loop_header_branch
            %847 = sbr.rel (%p845) target = $region441
          $region438: #{tpu_custom_call.1} parent=433 // loop_body
            %v851 = vld [vmem:[%s849] sm:%s842]
            %852 = vst [vmem:[%s850] sm:%s842] %v851
          $region439: #{tpu_custom_call.1} parent=433 // loop_footer
            %s848 = sadd.s32 1, %s844
          $region440: #{tpu_custom_call.1} parent=433 // loop_footer_branch
            %843 = sbr.rel target = $region436
          $region441: #{tpu_custom_call.1} parent=433 // loop_exit
            _
        $region434: #{tpu_custom_call.1} parent=27 // pred_fallthru
          _
        // Predicated region
        $region453: #{tpu_custom_call.1} parent=27 // pred_check
          _
        $region454: #{tpu_custom_call.1} parent=27 // pred_check_branch
          %876 = sbr.rel (0) target = $region456
        $region455: #{tpu_custom_call.1} parent=27 // pred_region
          %877 = vsyncadd %s833, 16
        $region456: #{tpu_custom_call.1} parent=27 // pred_fallthru
          _
        %s878 = scalar_lea.vmem [#allocation9], %s222
        %s879 = scalar_lea.vmem [#allocation2], 7
        %s880 = scalar_lea.sflag [#allocation4], 7
        %p882 = scmp.lt.u32.totalorder 1, 8
        %p883 = pneg %p882
        // Predicated region
        $region457: #{tpu_custom_call.1} parent=27 // pred_check
          _
        $region458: #{tpu_custom_call.1} parent=27 // pred_check_branch
          %885 = sbr.rel (%p882) target = $region460
        $region459: #{tpu_custom_call.1} parent=27 // pred_region
          %s900 = sand.u32 1, 7
          %p901 = scmp.eq.s32.totalorder %s900, 0
          %p902 = pneg %p901
          // Predicated region
          $region472: #{tpu_custom_call.1} parent=459 // pred_check
            _
          $region473: #{tpu_custom_call.1} parent=459 // pred_check_branch
            %904 = sbr.rel (%p901) target = $region475
          $region474: #{tpu_custom_call.1} parent=459 // pred_region
            %s905 = sand.u32 1, 7
            %s906 = ssub.s32 1, %s905
            %s907 = scalar_lea.vmem %s878, %s906 [#allocation9]
            %s908 = ssub.s32 1, %s905
            %s909 = scalar_lea.vmem %s879, %s908 [#allocation2]
            %s910 = sshllo.u32 0, %s905
            loop: start=0, step=1, limit=1
            $region476: #{tpu_custom_call.1} parent=474 // loop_pre_header
              _
            $region477: #{tpu_custom_call.1} parent=474 // loop_header
              %s912 = sphi 0, %s916
              %p913 = scmp.ge.s32.totalorder %s912, 1
              %s917 = sphi %s907, %s907
              %s918 = sphi %s909, %s909
            $region478: #{tpu_custom_call.1} parent=474 // loop_header_branch
              %915 = sbr.rel (%p913) target = $region482
            $region479: #{tpu_custom_call.1} parent=474 // loop_body
              %v919 = vld [vmem:[%s917] sm:%s910]
              %920 = vst [vmem:[%s918] sm:%s910] %v919
            $region480: #{tpu_custom_call.1} parent=474 // loop_footer
              %s916 = sadd.s32 1, %s912
            $region481: #{tpu_custom_call.1} parent=474 // loop_footer_branch
              %911 = sbr.rel target = $region477
            $region482: #{tpu_custom_call.1} parent=474 // loop_exit
              _
          $region475: #{tpu_custom_call.1} parent=459 // pred_fallthru
            _
        $region460: #{tpu_custom_call.1} parent=27 // pred_fallthru
          _
        // Predicated region
        $region461: #{tpu_custom_call.1} parent=27 // pred_check
          %p886 = pneg %p882
        $region462: #{tpu_custom_call.1} parent=27 // pred_check_branch
          %888 = sbr.rel (%p886) target = $region464
        $region463: #{tpu_custom_call.1} parent=27 // pred_region
          %s889 = sshllo.u32 0, 1
          loop: start=0, step=1, limit=1
          $region465: #{tpu_custom_call.1} parent=463 // loop_pre_header
            _
          $region466: #{tpu_custom_call.1} parent=463 // loop_header
            %s891 = sphi 0, %s895
            %p892 = scmp.ge.s32.totalorder %s891, 1
            %s896 = sphi %s878, %s878
            %s897 = sphi %s879, %s879
          $region467: #{tpu_custom_call.1} parent=463 // loop_header_branch
            %894 = sbr.rel (%p892) target = $region471
          $region468: #{tpu_custom_call.1} parent=463 // loop_body
            %v898 = vld [vmem:[%s896] sm:%s889]
            %899 = vst [vmem:[%s897] sm:%s889] %v898
          $region469: #{tpu_custom_call.1} parent=463 // loop_footer
            %s895 = sadd.s32 1, %s891
          $region470: #{tpu_custom_call.1} parent=463 // loop_footer_branch
            %890 = sbr.rel target = $region466
          $region471: #{tpu_custom_call.1} parent=463 // loop_exit
            _
        $region464: #{tpu_custom_call.1} parent=27 // pred_fallthru
          _
        // Predicated region
        $region483: #{tpu_custom_call.1} parent=27 // pred_check
          _
        $region484: #{tpu_custom_call.1} parent=27 // pred_check_branch
          %923 = sbr.rel (0) target = $region486
        $region485: #{tpu_custom_call.1} parent=27 // pred_region
          %924 = vsyncadd %s880, 16
        $region486: #{tpu_custom_call.1} parent=27 // pred_fallthru
          _
        %s925 = scalar_lea.vmem [#allocation12], %s223
        %s926 = scalar_lea.vmem [#allocation3], 7
        %s927 = scalar_lea.sflag [#allocation5], 7
        %p929 = scmp.lt.u32.totalorder 1, 8
        %p930 = pneg %p929
        // Predicated region
        $region487: #{tpu_custom_call.1} parent=27 // pred_check
          _
        $region488: #{tpu_custom_call.1} parent=27 // pred_check_branch
          %932 = sbr.rel (%p929) target = $region490
        $region489: #{tpu_custom_call.1} parent=27 // pred_region
          %s947 = sand.u32 1, 7
          %p948 = scmp.eq.s32.totalorder %s947, 0
          %p949 = pneg %p948
          // Predicated region
          $region502: #{tpu_custom_call.1} parent=489 // pred_check
            _
          $region503: #{tpu_custom_call.1} parent=489 // pred_check_branch
            %951 = sbr.rel (%p948) target = $region505
          $region504: #{tpu_custom_call.1} parent=489 // pred_region
            %s952 = sand.u32 1, 7
            %s953 = ssub.s32 1, %s952
            %s954 = scalar_lea.vmem %s925, %s953 [#allocation12]
            %s955 = ssub.s32 1, %s952
            %s956 = scalar_lea.vmem %s926, %s955 [#allocation3]
            %s957 = sshllo.u32 0, %s952
            loop: start=0, step=1, limit=1
            $region506: #{tpu_custom_call.1} parent=504 // loop_pre_header
              _
            $region507: #{tpu_custom_call.1} parent=504 // loop_header
              %s959 = sphi 0, %s963
              %p960 = scmp.ge.s32.totalorder %s959, 1
              %s964 = sphi %s954, %s954
              %s965 = sphi %s956, %s956
            $region508: #{tpu_custom_call.1} parent=504 // loop_header_branch
              %962 = sbr.rel (%p960) target = $region512
            $region509: #{tpu_custom_call.1} parent=504 // loop_body
              %v966 = vld [vmem:[%s964] sm:%s957]
              %967 = vst [vmem:[%s965] sm:%s957] %v966
            $region510: #{tpu_custom_call.1} parent=504 // loop_footer
              %s963 = sadd.s32 1, %s959
            $region511: #{tpu_custom_call.1} parent=504 // loop_footer_branch
              %958 = sbr.rel target = $region507
            $region512: #{tpu_custom_call.1} parent=504 // loop_exit
              _
          $region505: #{tpu_custom_call.1} parent=489 // pred_fallthru
            _
        $region490: #{tpu_custom_call.1} parent=27 // pred_fallthru
          _
        // Predicated region
        $region491: #{tpu_custom_call.1} parent=27 // pred_check
          %p933 = pneg %p929
        $region492: #{tpu_custom_call.1} parent=27 // pred_check_branch
          %935 = sbr.rel (%p933) target = $region494
        $region493: #{tpu_custom_call.1} parent=27 // pred_region
          %s936 = sshllo.u32 0, 1
          loop: start=0, step=1, limit=1
          $region495: #{tpu_custom_call.1} parent=493 // loop_pre_header
            _
          $region496: #{tpu_custom_call.1} parent=493 // loop_header
            %s938 = sphi 0, %s942
            %p939 = scmp.ge.s32.totalorder %s938, 1
            %s943 = sphi %s925, %s925
            %s944 = sphi %s926, %s926
          $region497: #{tpu_custom_call.1} parent=493 // loop_header_branch
            %941 = sbr.rel (%p939) target = $region501
          $region498: #{tpu_custom_call.1} parent=493 // loop_body
            %v945 = vld [vmem:[%s943] sm:%s936]
            %946 = vst [vmem:[%s944] sm:%s936] %v945
          $region499: #{tpu_custom_call.1} parent=493 // loop_footer
            %s942 = sadd.s32 1, %s938
          $region500: #{tpu_custom_call.1} parent=493 // loop_footer_branch
            %937 = sbr.rel target = $region496
          $region501: #{tpu_custom_call.1} parent=493 // loop_exit
            _
        $region494: #{tpu_custom_call.1} parent=27 // pred_fallthru
          _
        // Predicated region
        $region513: #{tpu_custom_call.1} parent=27 // pred_check
          _
        $region514: #{tpu_custom_call.1} parent=27 // pred_check_branch
          %970 = sbr.rel (0) target = $region516
        $region515: #{tpu_custom_call.1} parent=27 // pred_region
          %971 = vsyncadd %s927, 16
        $region516: #{tpu_custom_call.1} parent=27 // pred_fallthru
          _
        %s972 = smul.u32 1, 1
        %s973 = sshll.u32 %s972, 4
        %974 = dma.done [#allocation4], %s973
        %s975 = sshll.u32 %s972, 4
        %976 = dma.done [#allocation5], %s975
        %s977 = sshll.u32 %s972, 4
        %978 = dma.done %s316, %s977
        %s979 = sshll.u32 %s972, 4
        %980 = dma.done %s363, %s979
        %s981 = sshll.u32 %s972, 4
        %982 = dma.done %s410, %s981
        %s983 = sshll.u32 %s972, 4
        %984 = dma.done %s457, %s983
        %s985 = sshll.u32 %s972, 4
        %986 = dma.done %s504, %s985
        %s987 = sshll.u32 %s972, 4
        %988 = dma.done %s551, %s987
        %s989 = sshll.u32 %s972, 4
        %990 = dma.done %s598, %s989
        %s991 = sshll.u32 %s972, 4
        %992 = dma.done %s645, %s991
        %s993 = sshll.u32 %s972, 4
        %994 = dma.done %s692, %s993
        %s995 = sshll.u32 %s972, 4
        %996 = dma.done %s739, %s995
        %s997 = sshll.u32 %s972, 4
        %998 = dma.done %s786, %s997
        %s999 = sshll.u32 %s972, 4
        %1000 = dma.done %s833, %s999
        %s1001 = sshll.u32 %s972, 4
        %1002 = dma.done %s880, %s1001
        %s1003 = sshll.u32 %s972, 4
        %1004 = dma.done %s927, %s1003
        %v1005 = vld [vmem:[#allocation2] sm:$0xff]
        %1006 = vst [vmem:[%s192] sm:$0xff] %v1005
        %v1007 = vld [vmem:[#allocation3] sm:$0xff]
        %1008 = vst [vmem:[%s199] sm:$0xff] %v1007
        %s1009 = sand.u32 %s83, 1
        %s1010 = scalar_lea.sflag [#allocation11], %s1009
        %s1011 = sand.u32 %s83, 1
        %s1012 = smul.addr %s1011, 8
        %s1013 = scalar_lea.vmem [#allocation14], %s1012
        %s1014 = sand.u32 %s109, 1
        %s1015 = scalar_lea.sflag [#allocation16], %s1014
        %s1016 = sand.u32 %s109, 1
        %s1017 = smul.addr %s1016, 8
        %s1018 = scalar_lea.vmem [#allocation15], %s1017
        // Predicated region
        $region517: #{tpu_custom_call.1} parent=27 // pred_check
          %p1019 = pneg %p93
        $region518: #{tpu_custom_call.1} parent=27 // pred_check_branch
          %1021 = sbr.rel (%p1019) target = $region520
        $region519: #{tpu_custom_call.1} parent=27 // pred_region
          %s1023 = ssub.s32 128, 128
          %1024 = vsyncadd %s1010, %s1023
          %s1025 = smul.addr %s33, 128
          %s1026 = scalar_lea.hbm %s4, %s1025
          %s1028 = sshll.u32 %s1013, 4
          %s1029 = int_to_ptr.vmem [resolvable:$true] %s1028
          %1031 = dma.vmem_to_hbm [thread:$0]  %s1029, 128, %s1026, %s1010
        $region520: #{tpu_custom_call.1} parent=27 // pred_fallthru
          _
        // Predicated region
        $region521: #{tpu_custom_call.1} parent=27 // pred_check
          %p1032 = pneg %p119
        $region522: #{tpu_custom_call.1} parent=27 // pred_check_branch
          %1034 = sbr.rel (%p1032) target = $region524
        $region523: #{tpu_custom_call.1} parent=27 // pred_region
          %s1036 = ssub.s32 128, 128
          %1037 = vsyncadd %s1015, %s1036
          %s1038 = smul.addr %s33, 128
          %s1039 = scalar_lea.hbm %s5, %s1038
          %s1041 = sshll.u32 %s1018, 4
          %s1042 = int_to_ptr.vmem [resolvable:$true] %s1041
          %1044 = dma.vmem_to_hbm [thread:$0]  %s1042, 128, %s1039, %s1015
        $region524: #{tpu_custom_call.1} parent=27 // pred_fallthru
          _
      $region28: #{tpu_custom_call.1} parent=5 // pred_fallthru
        _
      %p1045 = scmp.le.s32.totalorder 2, %s28
      // Predicated region
      $region525: #{tpu_custom_call.1} parent=5 // pred_check
        %p1046 = pneg %p1045
      $region526: #{tpu_custom_call.1} parent=5 // pred_check_branch
        %1048 = sbr.rel (%p1046) target = $region528
      $region527: #{tpu_custom_call.1} parent=5 // pred_region
        %s1049 = ssub.s32 %s28, 2
        // Predicated region
        $region529: #{tpu_custom_call.1} parent=527 // pred_check
          %p1050 = pneg %p99
        $region530: #{tpu_custom_call.1} parent=527 // pred_check_branch
          %1052 = sbr.rel (%p1050) target = $region532
        $region531: #{tpu_custom_call.1} parent=527 // pred_region
          %s1053 = sand.u32 %s84, 1
          %s1054 = scalar_lea.sflag [#allocation11], %s1053
          %s1055 = sand.u32 %s84, 1
          %s1056 = smul.addr %s1055, 8
          %s1057 = scalar_lea.vmem [#allocation14], %s1056
          %1058 = dma.done %s1054, 128
        $region532: #{tpu_custom_call.1} parent=527 // pred_fallthru
          _
        // Predicated region
        $region533: #{tpu_custom_call.1} parent=527 // pred_check
          %p1059 = pneg %p125
        $region534: #{tpu_custom_call.1} parent=527 // pred_check_branch
          %1061 = sbr.rel (%p1059) target = $region536
        $region535: #{tpu_custom_call.1} parent=527 // pred_region
          %s1062 = sand.u32 %s110, 1
          %s1063 = scalar_lea.sflag [#allocation16], %s1062
          %s1064 = sand.u32 %s110, 1
          %s1065 = smul.addr %s1064, 8
          %s1066 = scalar_lea.vmem [#allocation15], %s1065
          %1067 = dma.done %s1063, 128
        $region536: #{tpu_custom_call.1} parent=527 // pred_fallthru
          _
      $region528: #{tpu_custom_call.1} parent=5 // pred_fallthru
        _
    $region6: #{tpu_custom_call.1} parent=1 // loop_footer
      %s32 = sadd.s32 1, %s28
    $region7: #{tpu_custom_call.1} parent=1 // loop_footer_branch
      %27 = sbr.rel target = $region3
    $region8: #{tpu_custom_call.1} parent=1 // loop_exit
      _
    %1068 = vsyncpa [#allocation10], 1
    %s1069 = scalar_lea.sflag [#allocation10], 1
    %1070 = vsyncpa %s1069, 1
    %1071 = vsyncpa [#allocation13], 1
    %1072 = vsyncpa [#allocation11], 1
    %s1073 = scalar_lea.sflag [#allocation11], 1
    %1074 = vsyncpa %s1073, 1
    %1075 = vsyncpa [#allocation16], 1
    %s1076 = scalar_lea.sflag [#allocation16], 1
    %1077 = vsyncpa %s1076, 1
  %1078 = vsyncmov [#allocation4]
  %s1079 = vpop.sfrf %1078
  %p1080 = scmp.eq.s32.totalorder %s1079, 0
  %p1081 = pneg %p1080
  %1083 = shalt.err (%p1081)
  %s1084 = scalar_lea.sflag [#allocation4], 1
  %1085 = vsyncmov %s1084
  %s1086 = vpop.sfrf %1085
  %p1087 = scmp.eq.s32.totalorder %s1086, 0
  %p1088 = pneg %p1087
  %1090 = shalt.err (%p1088)
  %s1091 = scalar_lea.sflag [#allocation4], 2
  %1092 = vsyncmov %s1091
  %s1093 = vpop.sfrf %1092
  %p1094 = scmp.eq.s32.totalorder %s1093, 0
  %p1095 = pneg %p1094
  %1097 = shalt.err (%p1095)
  %s1098 = scalar_lea.sflag [#allocation4], 3
  %1099 = vsyncmov %s1098
  %s1100 = vpop.sfrf %1099
  %p1101 = scmp.eq.s32.totalorder %s1100, 0
  %p1102 = pneg %p1101
  %1104 = shalt.err (%p1102)
  %s1105 = scalar_lea.sflag [#allocation4], 4
  %1106 = vsyncmov %s1105
  %s1107 = vpop.sfrf %1106
  %p1108 = scmp.eq.s32.totalorder %s1107, 0
  %p1109 = pneg %p1108
  %1111 = shalt.err (%p1109)
  %s1112 = scalar_lea.sflag [#allocation4], 5
  %1113 = vsyncmov %s1112
  %s1114 = vpop.sfrf %1113
  %p1115 = scmp.eq.s32.totalorder %s1114, 0
  %p1116 = pneg %p1115
  %1118 = shalt.err (%p1116)
  %s1119 = scalar_lea.sflag [#allocation4], 6
  %1120 = vsyncmov %s1119
  %s1121 = vpop.sfrf %1120
  %p1122 = scmp.eq.s32.totalorder %s1121, 0
  %p1123 = pneg %p1122
  %1125 = shalt.err (%p1123)
  %s1126 = scalar_lea.sflag [#allocation4], 7
  %1127 = vsyncmov %s1126
  %s1128 = vpop.sfrf %1127
  %p1129 = scmp.eq.s32.totalorder %s1128, 0
  %p1130 = pneg %p1129
  %1132 = shalt.err (%p1130)
  %1133 = vsyncmov [#allocation5]
  %s1134 = vpop.sfrf %1133
  %p1135 = scmp.eq.s32.totalorder %s1134, 0
  %p1136 = pneg %p1135
  %1138 = shalt.err (%p1136)
  %s1139 = scalar_lea.sflag [#allocation5], 1
  %1140 = vsyncmov %s1139
  %s1141 = vpop.sfrf %1140
  %p1142 = scmp.eq.s32.totalorder %s1141, 0
  %p1143 = pneg %p1142
  %1145 = shalt.err (%p1143)
  %s1146 = scalar_lea.sflag [#allocation5], 2
  %1147 = vsyncmov %s1146
  %s1148 = vpop.sfrf %1147
  %p1149 = scmp.eq.s32.totalorder %s1148, 0
  %p1150 = pneg %p1149
  %1152 = shalt.err (%p1150)
  %s1153 = scalar_lea.sflag [#allocation5], 3
  %1154 = vsyncmov %s1153
  %s1155 = vpop.sfrf %1154
  %p1156 = scmp.eq.s32.totalorder %s1155, 0
  %p1157 = pneg %p1156
  %1159 = shalt.err (%p1157)
  %s1160 = scalar_lea.sflag [#allocation5], 4
  %1161 = vsyncmov %s1160
  %s1162 = vpop.sfrf %1161
  %p1163 = scmp.eq.s32.totalorder %s1162, 0
  %p1164 = pneg %p1163
  %1166 = shalt.err (%p1164)
  %s1167 = scalar_lea.sflag [#allocation5], 5
  %1168 = vsyncmov %s1167
  %s1169 = vpop.sfrf %1168
  %p1170 = scmp.eq.s32.totalorder %s1169, 0
  %p1171 = pneg %p1170
  %1173 = shalt.err (%p1171)
  %s1174 = scalar_lea.sflag [#allocation5], 6
  %1175 = vsyncmov %s1174
  %s1176 = vpop.sfrf %1175
  %p1177 = scmp.eq.s32.totalorder %s1176, 0
  %p1178 = pneg %p1177
  %1180 = shalt.err (%p1178)
  %s1181 = scalar_lea.sflag [#allocation5], 7
  %1182 = vsyncmov %s1181
  %s1183 = vpop.sfrf %1182
  %p1184 = scmp.eq.s32.totalorder %s1183, 0
  %p1185 = pneg %p1184
  %1187 = shalt.err (%p1185)

</llo_original>
